<compile_context>
chip_gen: v7x
topology: tpu7x:2x2x1
jax: 0.10.0
libtpu: 0.0.40
codegen_flags: <defaults>
</compile_context>

<pallas_src>
import functools

import jax
import jax.numpy as jnp
from jax.experimental import pallas as pl
from jax.experimental.pallas import tpu as pltpu


def _layer_norm(v, w, b, eps):
    mu = jnp.mean(v, axis=-1, keepdims=True)
    var = jnp.mean((v - mu) ** 2, axis=-1, keepdims=True)
    return (v - mu) * jax.lax.rsqrt(var + eps) * w + b


def encoder_layer_kernel(x_ref, wqkv_ref, bqkv_ref, wo_ref, bo_ref,
                         ln1w_ref, ln1b_ref, w1_ref, b1_ref, w2_ref, b2_ref,
                         ln2w_ref, ln2b_ref, o_ref, *,
                         b_tile, seq_len, num_heads, eps, dff_chunk):
    """One grid step = one batch tile; all heads + FFN + LayerNorms fused."""
    x = x_ref[...]                                     # (m, E) token-major slab
    m, E = x.shape
    L = seq_len
    H = num_heads
    hd = E // H
    scale = 1.0 / float(hd) ** 0.5

    # ---- packed QKV projection: one wide MXU matmul (M x E x 3E) ----
    qkv = jnp.dot(x, wqkv_ref[...], preferred_element_type=jnp.float32) + bqkv_ref[...]

    # ---- split heads: static lane slices + leading-dim reshapes only ----
    # (avoids an in-kernel rank-4 transpose; produces (H*b, L, hd) batched operands)
    def split_heads(base, do_scale=False):
        parts = []
        for h in range(H):
            t = qkv[:, base + h * hd: base + (h + 1) * hd]    # (m, hd) lane slice
            if do_scale:
                t = t * scale
            parts.append(t.reshape(b_tile, L, hd))            # split rows (leading dim)
        return jnp.concatenate(parts, axis=0)                 # (H*b_tile, L, hd)

    q = split_heads(0 * E, do_scale=True)
    k = split_heads(1 * E)
    v = split_heads(2 * E)

    # ---- attention: ONE batched dot_general pair over (head, batch) ----
    s = jax.lax.dot_general(q, k, (((2,), (2,)), ((0,), (0,))),
                            preferred_element_type=jnp.float32)      # (H*b, L, L)
    s = s - jnp.max(s, axis=-1, keepdims=True)
    p = jnp.exp(s)
    p = p * (1.0 / jnp.sum(p, axis=-1, keepdims=True))               # per-row reciprocal
    ctx = jax.lax.dot_general(p, v, (((2,), (1,)), ((0,), (0,))),
                              preferred_element_type=jnp.float32)    # (H*b, L, hd)

    # ---- merge heads back into lanes -> (m, E) ----
    ctx2d = jnp.concatenate(
        [ctx[h * b_tile:(h + 1) * b_tile].reshape(m, hd) for h in range(H)],
        axis=1)

    # ---- single full-contraction out-projection ----
    attn = jnp.dot(ctx2d, wo_ref[...], preferred_element_type=jnp.float32) + bo_ref[...]

    # dropout1 = identity (eval-mode semantics)
    y = _layer_norm(x + attn, ln1w_ref[...], ln1b_ref[...], eps)

    # ---- feed-forward (ReLU), chunked over DFF when large ----
    dff = w1_ref.shape[-1]
    if dff <= dff_chunk or dff % dff_chunk != 0:
        h1 = jnp.maximum(
            jnp.dot(y, w1_ref[...], preferred_element_type=jnp.float32) + b1_ref[...],
            0.0)
        ff = jnp.dot(h1, w2_ref[...], preferred_element_type=jnp.float32)
    else:
        def body(c, acc):
            off = pl.multiple_of(c * dff_chunk, dff_chunk)
            w1c = w1_ref[:, pl.ds(off, dff_chunk)]
            b1c = b1_ref[:, pl.ds(off, dff_chunk)]
            h1c = jnp.maximum(
                jnp.dot(y, w1c, preferred_element_type=jnp.float32) + b1c, 0.0)
            w2c = w2_ref[pl.ds(off, dff_chunk), :]
            return acc + jnp.dot(h1c, w2c, preferred_element_type=jnp.float32)
        ff = jax.lax.fori_loop(0, dff // dff_chunk, body,
                               jnp.zeros((m, E), jnp.float32))
    ff = ff + b2_ref[...]

    # dropout2 / inner dropout = identity (eval-mode semantics)
    o_ref[...] = _layer_norm(y + ff, ln2w_ref[...], ln2b_ref[...], eps)


def _pick_batch_tile(n, seq_len, target_rows=512):
    """Largest divisor of n whose row count (b*L) is (8,128)-legal and <= target.

    Maximizes the MXU M dimension (v5e/v6e: one TC, bigger M wins).  Falls back
    to the smallest legal divisor (bounded VMEM) rather than silently b=n.
    On v7x, multiple grid steps appear automatically for realistic N*L.
    """
    divisors = [d for d in range(1, n + 1) if n % d == 0]
    ok = [d for d in divisors if (d * seq_len) % 8 == 0] or [n]
    small = [d for d in ok if d * seq_len <= target_rows]
    return small[-1] if small else ok[0]


def transformer_encoder_layer_pallas(x, params, *, num_heads, eps=1e-8):
    """x: (L, N, E) float32 — PyTorch batch_first=False convention."""
    L, N, E = x.shape
    hd = E // num_heads
    assert hd * num_heads == E
    (w_in, b_in, w_out, b_out, ln1_w, ln1_b,
     w1, b1, w2, b2, ln2_w, ln2_b) = params

    # ---- host-side weight prep: pre-transposed so the kernel never runs `.T` ----
    w_qkv_t = w_in.T                 # (E, 3E) packed QKV projection
    w_out_t = w_out.T                # (E, E)
    w1_t = w1.T                      # (E, DFF)
    w2_t = w2.T                      # (DFF, E)
    dff = w1_t.shape[1]

    b_tile = _pick_batch_tile(N, L)
    m = b_tile * L
    grid = (N // b_tile,)

    # 2-D token-major slab; every in-kernel op is a plain 2-D/3-D matmul or rowwise op.
    xb = jnp.transpose(x, (1, 0, 2)).reshape(N * L, E)

    def const_spec(shape):           # resident across the whole (1-D) grid
        nd = len(shape)
        return pl.BlockSpec(shape, lambda i, _nd=nd: (0,) * _nd)

    out = pl.pallas_call(
        functools.partial(encoder_layer_kernel, b_tile=b_tile, seq_len=L,
                          num_heads=num_heads, eps=eps, dff_chunk=512),
        out_shape=jax.ShapeDtypeStruct((N * L, E), jnp.float32),
        grid=grid,
        in_specs=[
            pl.BlockSpec((m, E), lambda i: (i, 0)),             # x slab (pipelined)
            const_spec((E, 3 * E)), const_spec((1, 3 * E)),     # W_qkv^T, b_qkv
            const_spec((E, E)), const_spec((1, E)),             # W_out^T, b_out
            const_spec((1, E)), const_spec((1, E)),             # ln1 w, b
            const_spec((E, dff)), const_spec((1, dff)),         # W1^T, b1
            const_spec((dff, E)), const_spec((1, E)),           # W2^T, b2
            const_spec((1, E)), const_spec((1, E)),             # ln2 w, b
        ],
        out_specs=pl.BlockSpec((m, E), lambda i: (i, 0)),
        compiler_params=pltpu.CompilerParams(
            dimension_semantics=("parallel",),
            vmem_limit_bytes=48 * 1024 * 1024),                 # above 16/32 MiB defaults
    )(xb, w_qkv_t, b_in, w_out_t, b_out,
      ln1_w, ln1_b, w1_t, b1, w2_t, b2, ln2_w, ln2_b)

    return jnp.transpose(out.reshape(N, L, E), (1, 0, 2))       # back to (L, N, E)


def transformer_encoder_layer_ref(x, params, *, num_heads, eps=1e-8):
    """Pure-JAX reference of the same forward (for a correctness check)."""
    (w_in, b_in, w_out, b_out, ln1_w, ln1_b,
     w1, b1, w2, b2, ln2_w, ln2_b) = params
    L, N, E = x.shape
    hd = E // num_heads

    qkv = x @ w_in.T + b_in[0]                    # (L, N, 3E)
    q, k, v = jnp.split(qkv, 3, axis=-1)
    q = q / jnp.sqrt(float(hd))

    def heads(t):                                 # (L,N,E) -> (N,H,L,hd)
        return jnp.transpose(t.reshape(L, N, num_heads, hd), (1, 2, 0, 3))

    qh, kh, vh = heads(q), heads(k), heads(v)
    s = jnp.einsum('nhld,nhsd->nhls', qh, kh)
    p = jax.nn.softmax(s, axis=-1)
    ctx = jnp.einsum('nhls,nhsd->nhld', p, vh)
    ctx = jnp.transpose(ctx, (2, 0, 1, 3)).reshape(L, N, E)
    attn = ctx @ w_out.T + b_out[0]

    def ln(t, w, b):
        mu = jnp.mean(t, -1, keepdims=True)
        var = jnp.mean((t - mu) ** 2, -1, keepdims=True)
        return (t - mu) / jnp.sqrt(var + eps) * w[0] + b[0]

    y = ln(x + attn, ln1_w, ln1_b)
    ff = jnp.maximum(y @ w1.T + b1[0], 0.0) @ w2.T + b2[0]
    return ln(y + ff, ln2_w, ln2_b)


def make_params(key, d_model, dim_forward):
    """Deterministic parameter init mirroring the module's shapes."""
    ks = jax.random.split(key, 10)
    s_in = (6.0 / (3 * d_model + d_model)) ** 0.5     # xavier-uniform-ish
    w_in = jax.random.uniform(ks[0], (3 * d_model, d_model), jnp.float32,
                              -s_in, s_in)
    b_in = jnp.zeros((1, 3 * d_model), jnp.float32)    # constant_(0.0)
    w_out = jax.random.uniform(ks[1], (d_model, d_model), jnp.float32,
                               -0.2, 0.2)
    b_out = jnp.zeros((1, d_model), jnp.float32)        # constant_(0.0)
    ln1_w = 1.0 + 0.1 * jax.random.normal(ks[2], (1, d_model), jnp.float32)
    ln1_b = 0.1 * jax.random.normal(ks[3], (1, d_model), jnp.float32)
    w1 = jax.random.uniform(ks[4], (dim_forward, d_model), jnp.float32,
                            -0.2, 0.2)
    b1 = 0.05 * jax.random.normal(ks[5], (1, dim_forward), jnp.float32)
    w2 = jax.random.uniform(ks[6], (d_model, dim_forward), jnp.float32,
                            -0.2, 0.2)
    b2 = 0.05 * jax.random.normal(ks[7], (1, d_model), jnp.float32)
    ln2_w = 1.0 + 0.1 * jax.random.normal(ks[8], (1, d_model), jnp.float32)
    ln2_b = 0.1 * jax.random.normal(ks[9], (1, d_model), jnp.float32)
    return (w_in, b_in, w_out, b_out, ln1_w, ln1_b,
            w1, b1, w2, b2, ln2_w, ln2_b)


if __name__ == "__main__":
    # small shapes consistent with the module: seq=8, batch=2, d_model=32,
    # n_head=4, dim_forward=64  (input layout (L, N, E), batch_first=False)
    L, N, E, H, DFF = 8, 2, 32, 4, 64
    key = jax.random.PRNGKey(0)
    kx, kp = jax.random.split(key)
    x = jax.random.normal(kx, (L, N, E), jnp.float32)
    params = make_params(kp, E, DFF)

    out = transformer_encoder_layer_pallas(x, params, num_heads=H, eps=1e-8)
    out = jax.block_until_ready(out)

    ref = transformer_encoder_layer_ref(x, params, num_heads=H, eps=1e-8)
    assert out.shape == (L, N, E)
    err = float(jnp.max(jnp.abs(out - ref)))
    assert jnp.allclose(out, ref, atol=1e-4, rtol=1e-4), err

    # TODO(synk): dropout layers are no-ops here (eval-mode forward semantics); the
    # torch `_transformer_encoder_layer_fwd` fast path is mathematically identical.
    print("KERNEL_OK")
</pallas_src>

<mosaic_0001>
module attributes {stable_mosaic.version = 11 : i64} {
  func.func @encoder_layer_kernel(%arg0: i32, %arg1: memref<16x32xf32, #tpu.memory_space<vmem>>, %arg2: memref<32x96xf32, #tpu.memory_space<vmem>>, %arg3: memref<1x96xf32, #tpu.memory_space<vmem>>, %arg4: memref<32x32xf32, #tpu.memory_space<vmem>>, %arg5: memref<1x32xf32, #tpu.memory_space<vmem>>, %arg6: memref<1x32xf32, #tpu.memory_space<vmem>>, %arg7: memref<1x32xf32, #tpu.memory_space<vmem>>, %arg8: memref<32x64xf32, #tpu.memory_space<vmem>>, %arg9: memref<1x64xf32, #tpu.memory_space<vmem>>, %arg10: memref<64x32xf32, #tpu.memory_space<vmem>>, %arg11: memref<1x32xf32, #tpu.memory_space<vmem>>, %arg12: memref<1x32xf32, #tpu.memory_space<vmem>>, %arg13: memref<1x32xf32, #tpu.memory_space<vmem>>, %arg14: memref<16x32xf32, #tpu.memory_space<vmem>>) attributes {dimension_semantics = [#tpu.dimension_semantics<parallel>], iteration_bounds = array<i64: 1>, scalar_prefetch = 0 : i64, scratch_operands = 0 : i64, tpu.core_type = #tpu.core_type<tc>, window_params = [{transform_indices = @transform_0, window_bounds = array<i64: 16, 32>}, {pipeline_mode = #tpu.pipeline_mode<synchronous>, transform_indices = @transform_1, window_bounds = array<i64: 32, 96>}, {pipeline_mode = #tpu.pipeline_mode<synchronous>, transform_indices = @transform_2, window_bounds = array<i64: 1, 96>}, {pipeline_mode = #tpu.pipeline_mode<synchronous>, transform_indices = @transform_3, window_bounds = array<i64: 32, 32>}, {pipeline_mode = #tpu.pipeline_mode<synchronous>, transform_indices = @transform_4, window_bounds = array<i64: 1, 32>}, {pipeline_mode = #tpu.pipeline_mode<synchronous>, transform_indices = @transform_5, window_bounds = array<i64: 1, 32>}, {pipeline_mode = #tpu.pipeline_mode<synchronous>, transform_indices = @transform_6, window_bounds = array<i64: 1, 32>}, {pipeline_mode = #tpu.pipeline_mode<synchronous>, transform_indices = @transform_7, window_bounds = array<i64: 32, 64>}, {pipeline_mode = #tpu.pipeline_mode<synchronous>, transform_indices = @transform_8, window_bounds = array<i64: 1, 64>}, {pipeline_mode = #tpu.pipeline_mode<synchronous>, transform_indices = @transform_9, window_bounds = array<i64: 64, 32>}, {pipeline_mode = #tpu.pipeline_mode<synchronous>, transform_indices = @transform_10, window_bounds = array<i64: 1, 32>}, {pipeline_mode = #tpu.pipeline_mode<synchronous>, transform_indices = @transform_11, window_bounds = array<i64: 1, 32>}, {pipeline_mode = #tpu.pipeline_mode<synchronous>, transform_indices = @transform_12, window_bounds = array<i64: 1, 32>}, {transform_indices = @transform_13, window_bounds = array<i64: 16, 32>}]} {
    %c0 = arith.constant 0 : index
    %c0_0 = arith.constant 0 : index
    %0 = vector.load %arg1[%c0, %c0_0] : memref<16x32xf32, #tpu.memory_space<vmem>>, vector<16x32xf32>
    %c0_1 = arith.constant 0 : index
    %c0_2 = arith.constant 0 : index
    %1 = vector.load %arg2[%c0_1, %c0_2] : memref<32x96xf32, #tpu.memory_space<vmem>>, vector<32x96xf32>
    %cst = arith.constant dense<0.000000e+00> : vector<16x96xf32>
    %2 = tpu.matmul %0, %1, %cst {dimension_numbers = #tpu.dot_dimension_numbers<[1], [0], [0], [1], [0, 0, 1, 1], [], []>} : vector<16x32xf32>, vector<32x96xf32>, vector<16x96xf32> -> vector<16x96xf32>
    %c0_3 = arith.constant 0 : index
    %c0_4 = arith.constant 0 : index
    %3 = vector.load %arg3[%c0_3, %c0_4] : memref<1x96xf32, #tpu.memory_space<vmem>>, vector<1x96xf32>
    %4 = vector.broadcast %3 : vector<1x96xf32> to vector<16x96xf32>
    %5 = arith.addf %2, %4 : vector<16x96xf32>
    %6 = vector.extract_strided_slice %5 {offsets = [0, 0], sizes = [16, 8], strides = [1, 1]} : vector<16x96xf32> to vector<16x8xf32>
    %cst_5 = arith.constant 0.353553385 : f32
    %7 = vector.broadcast %cst_5 : f32 to vector<16x8xf32>
    %8 = arith.mulf %6, %7 : vector<16x8xf32>
    %9 = vector.shape_cast %8 : vector<16x8xf32> to vector<2x8x8xf32>
    %10 = vector.extract_strided_slice %5 {offsets = [0, 8], sizes = [16, 8], strides = [1, 1]} : vector<16x96xf32> to vector<16x8xf32>
    %cst_6 = arith.constant 0.353553385 : f32
    %11 = vector.broadcast %cst_6 : f32 to vector<16x8xf32>
    %12 = arith.mulf %10, %11 : vector<16x8xf32>
    %13 = vector.shape_cast %12 : vector<16x8xf32> to vector<2x8x8xf32>
    %14 = vector.extract_strided_slice %5 {offsets = [0, 16], sizes = [16, 8], strides = [1, 1]} : vector<16x96xf32> to vector<16x8xf32>
    %cst_7 = arith.constant 0.353553385 : f32
    %15 = vector.broadcast %cst_7 : f32 to vector<16x8xf32>
    %16 = arith.mulf %14, %15 : vector<16x8xf32>
    %17 = vector.shape_cast %16 : vector<16x8xf32> to vector<2x8x8xf32>
    %18 = vector.extract_strided_slice %5 {offsets = [0, 24], sizes = [16, 8], strides = [1, 1]} : vector<16x96xf32> to vector<16x8xf32>
    %cst_8 = arith.constant 0.353553385 : f32
    %19 = vector.broadcast %cst_8 : f32 to vector<16x8xf32>
    %20 = arith.mulf %18, %19 : vector<16x8xf32>
    %21 = vector.shape_cast %20 : vector<16x8xf32> to vector<2x8x8xf32>
    %22 = tpu.concatenate %9, %13, %17, %21 in 0 : vector<2x8x8xf32>, vector<2x8x8xf32>, vector<2x8x8xf32>, vector<2x8x8xf32> -> vector<8x8x8xf32>
    %23 = vector.extract_strided_slice %5 {offsets = [0, 32], sizes = [16, 8], strides = [1, 1]} : vector<16x96xf32> to vector<16x8xf32>
    %24 = vector.shape_cast %23 : vector<16x8xf32> to vector<2x8x8xf32>
    %25 = vector.extract_strided_slice %5 {offsets = [0, 40], sizes = [16, 8], strides = [1, 1]} : vector<16x96xf32> to vector<16x8xf32>
    %26 = vector.shape_cast %25 : vector<16x8xf32> to vector<2x8x8xf32>
    %27 = vector.extract_strided_slice %5 {offsets = [0, 48], sizes = [16, 8], strides = [1, 1]} : vector<16x96xf32> to vector<16x8xf32>
    %28 = vector.shape_cast %27 : vector<16x8xf32> to vector<2x8x8xf32>
    %29 = vector.extract_strided_slice %5 {offsets = [0, 56], sizes = [16, 8], strides = [1, 1]} : vector<16x96xf32> to vector<16x8xf32>
    %30 = vector.shape_cast %29 : vector<16x8xf32> to vector<2x8x8xf32>
    %31 = tpu.concatenate %24, %26, %28, %30 in 0 : vector<2x8x8xf32>, vector<2x8x8xf32>, vector<2x8x8xf32>, vector<2x8x8xf32> -> vector<8x8x8xf32>
    %32 = vector.extract_strided_slice %5 {offsets = [0, 64], sizes = [16, 8], strides = [1, 1]} : vector<16x96xf32> to vector<16x8xf32>
    %33 = vector.shape_cast %32 : vector<16x8xf32> to vector<2x8x8xf32>
    %34 = vector.extract_strided_slice %5 {offsets = [0, 72], sizes = [16, 8], strides = [1, 1]} : vector<16x96xf32> to vector<16x8xf32>
    %35 = vector.shape_cast %34 : vector<16x8xf32> to vector<2x8x8xf32>
    %36 = vector.extract_strided_slice %5 {offsets = [0, 80], sizes = [16, 8], strides = [1, 1]} : vector<16x96xf32> to vector<16x8xf32>
    %37 = vector.shape_cast %36 : vector<16x8xf32> to vector<2x8x8xf32>
    %38 = vector.extract_strided_slice %5 {offsets = [0, 88], sizes = [16, 8], strides = [1, 1]} : vector<16x96xf32> to vector<16x8xf32>
    %39 = vector.shape_cast %38 : vector<16x8xf32> to vector<2x8x8xf32>
    %40 = tpu.concatenate %33, %35, %37, %39 in 0 : vector<2x8x8xf32>, vector<2x8x8xf32>, vector<2x8x8xf32>, vector<2x8x8xf32> -> vector<8x8x8xf32>
    %cst_9 = arith.constant dense<0.000000e+00> : vector<8x8x8xf32>
    %41 = tpu.matmul %22, %31, %cst_9 {dimension_numbers = #tpu.dot_dimension_numbers<[2], [2], [1], [1], [0, 0, 0, 1, 1, 1], [0], [0]>} : vector<8x8x8xf32>, vector<8x8x8xf32>, vector<8x8x8xf32> -> vector<8x8x8xf32>
    %cst_10 = arith.constant dense<0xFF800000> : vector<8x8xf32>
    %42 = vector.multi_reduction <maximumf>, %41, %cst_10 [2] : vector<8x8x8xf32> to vector<8x8xf32>
    %43 = vector.shape_cast %42 : vector<8x8xf32> to vector<8x8x1xf32>
    %44 = vector.broadcast %43 : vector<8x8x1xf32> to vector<8x8x8xf32>
    %45 = arith.subf %41, %44 : vector<8x8x8xf32>
    %46 = math.exp %45 : vector<8x8x8xf32>
    %cst_11 = arith.constant dense<0.000000e+00> : vector<8x8xf32>
    %47 = vector.multi_reduction <add>, %46, %cst_11 [2] : vector<8x8x8xf32> to vector<8x8xf32>
    %48 = vector.shape_cast %47 : vector<8x8xf32> to vector<8x8x1xf32>
    %cst_12 = arith.constant 1.000000e+00 : f32
    %49 = vector.broadcast %cst_12 : f32 to vector<8x8x1xf32>
    %50 = arith.divf %49, %48 : vector<8x8x1xf32>
    %51 = vector.broadcast %50 : vector<8x8x1xf32> to vector<8x8x8xf32>
    %52 = arith.mulf %46, %51 : vector<8x8x8xf32>
    %cst_13 = arith.constant dense<0.000000e+00> : vector<8x8x8xf32>
    %53 = tpu.matmul %52, %40, %cst_13 {dimension_numbers = #tpu.dot_dimension_numbers<[2], [1], [1], [2], [0, 0, 0, 1, 1, 2], [0], [0]>} : vector<8x8x8xf32>, vector<8x8x8xf32>, vector<8x8x8xf32> -> vector<8x8x8xf32>
    %54 = vector.extract_strided_slice %53 {offsets = [0, 0, 0], sizes = [2, 8, 8], strides = [1, 1, 1]} : vector<8x8x8xf32> to vector<2x8x8xf32>
    %55 = vector.shape_cast %54 : vector<2x8x8xf32> to vector<16x8xf32>
    %56 = vector.extract_strided_slice %53 {offsets = [2, 0, 0], sizes = [2, 8, 8], strides = [1, 1, 1]} : vector<8x8x8xf32> to vector<2x8x8xf32>
    %57 = vector.shape_cast %56 : vector<2x8x8xf32> to vector<16x8xf32>
    %58 = vector.extract_strided_slice %53 {offsets = [4, 0, 0], sizes = [2, 8, 8], strides = [1, 1, 1]} : vector<8x8x8xf32> to vector<2x8x8xf32>
    %59 = vector.shape_cast %58 : vector<2x8x8xf32> to vector<16x8xf32>
    %60 = vector.extract_strided_slice %53 {offsets = [6, 0, 0], sizes = [2, 8, 8], strides = [1, 1, 1]} : vector<8x8x8xf32> to vector<2x8x8xf32>
    %61 = vector.shape_cast %60 : vector<2x8x8xf32> to vector<16x8xf32>
    %62 = tpu.concatenate %55, %57, %59, %61 in 1 : vector<16x8xf32>, vector<16x8xf32>, vector<16x8xf32>, vector<16x8xf32> -> vector<16x32xf32>
    %c0_14 = arith.constant 0 : index
    %c0_15 = arith.constant 0 : index
    %63 = vector.load %arg4[%c0_14, %c0_15] : memref<32x32xf32, #tpu.memory_space<vmem>>, vector<32x32xf32>
    %cst_16 = arith.constant dense<0.000000e+00> : vector<16x32xf32>
    %64 = tpu.matmul %62, %63, %cst_16 {dimension_numbers = #tpu.dot_dimension_numbers<[1], [0], [0], [1], [0, 0, 1, 1], [], []>} : vector<16x32xf32>, vector<32x32xf32>, vector<16x32xf32> -> vector<16x32xf32>
    %c0_17 = arith.constant 0 : index
    %c0_18 = arith.constant 0 : index
    %65 = vector.load %arg5[%c0_17, %c0_18] : memref<1x32xf32, #tpu.memory_space<vmem>>, vector<1x32xf32>
    %66 = vector.broadcast %65 : vector<1x32xf32> to vector<16x32xf32>
    %67 = arith.addf %64, %66 : vector<16x32xf32>
    %68 = arith.addf %0, %67 : vector<16x32xf32>
    %c0_19 = arith.constant 0 : index
    %c0_20 = arith.constant 0 : index
    %69 = vector.load %arg6[%c0_19, %c0_20] : memref<1x32xf32, #tpu.memory_space<vmem>>, vector<1x32xf32>
    %c0_21 = arith.constant 0 : index
    %c0_22 = arith.constant 0 : index
    %70 = vector.load %arg7[%c0_21, %c0_22] : memref<1x32xf32, #tpu.memory_space<vmem>>, vector<1x32xf32>
    %cst_23 = arith.constant dense<0.000000e+00> : vector<16xf32>
    %71 = vector.multi_reduction <add>, %68, %cst_23 [1] : vector<16x32xf32> to vector<16xf32>
    %72 = vector.shape_cast %71 : vector<16xf32> to vector<16x1xf32>
    %cst_24 = arith.constant 3.200000e+01 : f32
    %73 = vector.broadcast %cst_24 : f32 to vector<16x1xf32>
    %74 = arith.divf %72, %73 : vector<16x1xf32>
    %75 = vector.broadcast %74 : vector<16x1xf32> to vector<16x32xf32>
    %76 = arith.subf %68, %75 : vector<16x32xf32>
    %77 = arith.mulf %76, %76 : vector<16x32xf32>
    %cst_25 = arith.constant dense<0.000000e+00> : vector<16xf32>
    %78 = vector.multi_reduction <add>, %77, %cst_25 [1] : vector<16x32xf32> to vector<16xf32>
    %79 = vector.shape_cast %78 : vector<16xf32> to vector<16x1xf32>
    %cst_26 = arith.constant 3.200000e+01 : f32
    %80 = vector.broadcast %cst_26 : f32 to vector<16x1xf32>
    %81 = arith.divf %79, %80 : vector<16x1xf32>
    %82 = vector.broadcast %74 : vector<16x1xf32> to vector<16x32xf32>
    %83 = arith.subf %68, %82 : vector<16x32xf32>
    %cst_27 = arith.constant 9.99999993E-9 : f32
    %84 = vector.broadcast %cst_27 : f32 to vector<16x1xf32>
    %85 = arith.addf %81, %84 : vector<16x1xf32>
    %86 = math.rsqrt %85 : vector<16x1xf32>
    %87 = vector.broadcast %86 : vector<16x1xf32> to vector<16x32xf32>
    %88 = arith.mulf %83, %87 : vector<16x32xf32>
    %89 = vector.broadcast %69 : vector<1x32xf32> to vector<16x32xf32>
    %90 = arith.mulf %88, %89 : vector<16x32xf32>
    %91 = vector.broadcast %70 : vector<1x32xf32> to vector<16x32xf32>
    %92 = arith.addf %90, %91 : vector<16x32xf32>
    %c0_28 = arith.constant 0 : index
    %c0_29 = arith.constant 0 : index
    %93 = vector.load %arg8[%c0_28, %c0_29] : memref<32x64xf32, #tpu.memory_space<vmem>>, vector<32x64xf32>
    %cst_30 = arith.constant dense<0.000000e+00> : vector<16x64xf32>
    %94 = tpu.matmul %92, %93, %cst_30 {dimension_numbers = #tpu.dot_dimension_numbers<[1], [0], [0], [1], [0, 0, 1, 1], [], []>} : vector<16x32xf32>, vector<32x64xf32>, vector<16x64xf32> -> vector<16x64xf32>
    %c0_31 = arith.constant 0 : index
    %c0_32 = arith.constant 0 : index
    %95 = vector.load %arg9[%c0_31, %c0_32] : memref<1x64xf32, #tpu.memory_space<vmem>>, vector<1x64xf32>
    %96 = vector.broadcast %95 : vector<1x64xf32> to vector<16x64xf32>
    %97 = arith.addf %94, %96 : vector<16x64xf32>
    %cst_33 = arith.constant 0.000000e+00 : f32
    %98 = vector.broadcast %cst_33 : f32 to vector<16x64xf32>
    %99 = arith.maximumf %97, %98 : vector<16x64xf32>
    %c0_34 = arith.constant 0 : index
    %c0_35 = arith.constant 0 : index
    %100 = vector.load %arg10[%c0_34, %c0_35] : memref<64x32xf32, #tpu.memory_space<vmem>>, vector<64x32xf32>
    %cst_36 = arith.constant dense<0.000000e+00> : vector<16x32xf32>
    %101 = tpu.matmul %99, %100, %cst_36 {dimension_numbers = #tpu.dot_dimension_numbers<[1], [0], [0], [1], [0, 0, 1, 1], [], []>} : vector<16x64xf32>, vector<64x32xf32>, vector<16x32xf32> -> vector<16x32xf32>
    %c0_37 = arith.constant 0 : index
    %c0_38 = arith.constant 0 : index
    %102 = vector.load %arg11[%c0_37, %c0_38] : memref<1x32xf32, #tpu.memory_space<vmem>>, vector<1x32xf32>
    %103 = vector.broadcast %102 : vector<1x32xf32> to vector<16x32xf32>
    %104 = arith.addf %101, %103 : vector<16x32xf32>
    %105 = arith.addf %92, %104 : vector<16x32xf32>
    %c0_39 = arith.constant 0 : index
    %c0_40 = arith.constant 0 : index
    %106 = vector.load %arg12[%c0_39, %c0_40] : memref<1x32xf32, #tpu.memory_space<vmem>>, vector<1x32xf32>
    %c0_41 = arith.constant 0 : index
    %c0_42 = arith.constant 0 : index
    %107 = vector.load %arg13[%c0_41, %c0_42] : memref<1x32xf32, #tpu.memory_space<vmem>>, vector<1x32xf32>
    %cst_43 = arith.constant dense<0.000000e+00> : vector<16xf32>
    %108 = vector.multi_reduction <add>, %105, %cst_43 [1] : vector<16x32xf32> to vector<16xf32>
    %109 = vector.shape_cast %108 : vector<16xf32> to vector<16x1xf32>
    %cst_44 = arith.constant 3.200000e+01 : f32
    %110 = vector.broadcast %cst_44 : f32 to vector<16x1xf32>
    %111 = arith.divf %109, %110 : vector<16x1xf32>
    %112 = vector.broadcast %111 : vector<16x1xf32> to vector<16x32xf32>
    %113 = arith.subf %105, %112 : vector<16x32xf32>
    %114 = arith.mulf %113, %113 : vector<16x32xf32>
    %cst_45 = arith.constant dense<0.000000e+00> : vector<16xf32>
    %115 = vector.multi_reduction <add>, %114, %cst_45 [1] : vector<16x32xf32> to vector<16xf32>
    %116 = vector.shape_cast %115 : vector<16xf32> to vector<16x1xf32>
    %cst_46 = arith.constant 3.200000e+01 : f32
    %117 = vector.broadcast %cst_46 : f32 to vector<16x1xf32>
    %118 = arith.divf %116, %117 : vector<16x1xf32>
    %119 = vector.broadcast %111 : vector<16x1xf32> to vector<16x32xf32>
    %120 = arith.subf %105, %119 : vector<16x32xf32>
    %cst_47 = arith.constant 9.99999993E-9 : f32
    %121 = vector.broadcast %cst_47 : f32 to vector<16x1xf32>
    %122 = arith.addf %118, %121 : vector<16x1xf32>
    %123 = math.rsqrt %122 : vector<16x1xf32>
    %124 = vector.broadcast %123 : vector<16x1xf32> to vector<16x32xf32>
    %125 = arith.mulf %120, %124 : vector<16x32xf32>
    %126 = vector.broadcast %106 : vector<1x32xf32> to vector<16x32xf32>
    %127 = arith.mulf %125, %126 : vector<16x32xf32>
    %128 = vector.broadcast %107 : vector<1x32xf32> to vector<16x32xf32>
    %129 = arith.addf %127, %128 : vector<16x32xf32>
    %c0_48 = arith.constant 0 : index
    %c0_49 = arith.constant 0 : index
    %130 = vector.load %arg14[%c0_48, %c0_49] : memref<16x32xf32, #tpu.memory_space<vmem>>, vector<16x32xf32>
    tpu.vector_store %arg14[%c0_48, %c0_49], %129 {strides = array<i32>} : memref<16x32xf32, #tpu.memory_space<vmem>>, vector<16x32xf32>,
    return
  }
  func.func @transform_0(%arg0: i32) -> (i32, i32) {
    %c0_i32 = arith.constant 0 : i32
    %c0_i32_0 = arith.constant 0 : i32
    return %arg0, %c0_i32 : i32, i32
  }
  func.func @transform_1(%arg0: i32) -> (i32, i32) {
    %c0_i32 = arith.constant 0 : i32
    %c0_i32_0 = arith.constant 0 : i32
    %c0_i32_1 = arith.constant 0 : i32
    return %c0_i32, %c0_i32_0 : i32, i32
  }
  func.func @transform_2(%arg0: i32) -> (i32, i32) {
    %c0_i32 = arith.constant 0 : i32
    %c0_i32_0 = arith.constant 0 : i32
    %c0_i32_1 = arith.constant 0 : i32
    return %c0_i32, %c0_i32_0 : i32, i32
  }
  func.func @transform_3(%arg0: i32) -> (i32, i32) {
    %c0_i32 = arith.constant 0 : i32
    %c0_i32_0 = arith.constant 0 : i32
    %c0_i32_1 = arith.constant 0 : i32
    return %c0_i32, %c0_i32_0 : i32, i32
  }
  func.func @transform_4(%arg0: i32) -> (i32, i32) {
    %c0_i32 = arith.constant 0 : i32
    %c0_i32_0 = arith.constant 0 : i32
    %c0_i32_1 = arith.constant 0 : i32
    return %c0_i32, %c0_i32_0 : i32, i32
  }
  func.func @transform_5(%arg0: i32) -> (i32, i32) {
    %c0_i32 = arith.constant 0 : i32
    %c0_i32_0 = arith.constant 0 : i32
    %c0_i32_1 = arith.constant 0 : i32
    return %c0_i32, %c0_i32_0 : i32, i32
  }
  func.func @transform_6(%arg0: i32) -> (i32, i32) {
    %c0_i32 = arith.constant 0 : i32
    %c0_i32_0 = arith.constant 0 : i32
    %c0_i32_1 = arith.constant 0 : i32
    return %c0_i32, %c0_i32_0 : i32, i32
  }
  func.func @transform_7(%arg0: i32) -> (i32, i32) {
    %c0_i32 = arith.constant 0 : i32
    %c0_i32_0 = arith.constant 0 : i32
    %c0_i32_1 = arith.constant 0 : i32
    return %c0_i32, %c0_i32_0 : i32, i32
  }
  func.func @transform_8(%arg0: i32) -> (i32, i32) {
    %c0_i32 = arith.constant 0 : i32
    %c0_i32_0 = arith.constant 0 : i32
    %c0_i32_1 = arith.constant 0 : i32
    return %c0_i32, %c0_i32_0 : i32, i32
  }
  func.func @transform_9(%arg0: i32) -> (i32, i32) {
    %c0_i32 = arith.constant 0 : i32
    %c0_i32_0 = arith.constant 0 : i32
    %c0_i32_1 = arith.constant 0 : i32
    return %c0_i32, %c0_i32_0 : i32, i32
  }
  func.func @transform_10(%arg0: i32) -> (i32, i32) {
    %c0_i32 = arith.constant 0 : i32
    %c0_i32_0 = arith.constant 0 : i32
    %c0_i32_1 = arith.constant 0 : i32
    return %c0_i32, %c0_i32_0 : i32, i32
  }
  func.func @transform_11(%arg0: i32) -> (i32, i32) {
    %c0_i32 = arith.constant 0 : i32
    %c0_i32_0 = arith.constant 0 : i32
    %c0_i32_1 = arith.constant 0 : i32
    return %c0_i32, %c0_i32_0 : i32, i32
  }
  func.func @transform_12(%arg0: i32) -> (i32, i32) {
    %c0_i32 = arith.constant 0 : i32
    %c0_i32_0 = arith.constant 0 : i32
    %c0_i32_1 = arith.constant 0 : i32
    return %c0_i32, %c0_i32_0 : i32, i32
  }
  func.func @transform_13(%arg0: i32) -> (i32, i32) {
    %c0_i32 = arith.constant 0 : i32
    %c0_i32_0 = arith.constant 0 : i32
    return %arg0, %c0_i32 : i32, i32
  }
}

</mosaic_0001>

<llo_original>
// kernel: tpu_custom_call.1
$region0: #{tpu_custom_call.1}
  #allocation0 [shape = 'u32[]', space=smem, size = 0x4, offset = 0x4, fixed_abs, tag = 'smem constant byte address 0x4 - core index']
  #allocation1 [shape = 'u32[144,128]{1,0:T(1,128)}', space=vmem, size = 0x12000, scoped, tag = 'internal scratch']
  %s0 = inlined_call_operand.hbm [shape: f32[16,32], index: 0, kind: input, shape index: {}]
  %s1 = inlined_call_operand.vmem [shape: f32[32,96], index: 1, kind: input, shape index: {}]
  %s2 = inlined_call_operand.vmem [shape: f32[1,96], index: 2, kind: input, shape index: {}]
  %s3 = inlined_call_operand.vmem [shape: f32[32,32], index: 3, kind: input, shape index: {}]
  %s4 = inlined_call_operand.vmem [shape: f32[1,32], index: 4, kind: input, shape index: {}]
  %s5 = inlined_call_operand.hbm [shape: f32[1,32], index: 5, kind: input, shape index: {}]
  %s6 = inlined_call_operand.hbm [shape: f32[1,32], index: 6, kind: input, shape index: {}]
  %s7 = inlined_call_operand.vmem [shape: f32[32,64], index: 7, kind: input, shape index: {}]
  %s8 = inlined_call_operand.hbm [shape: f32[1,64], index: 8, kind: input, shape index: {}]
  %s9 = inlined_call_operand.vmem [shape: f32[64,32], index: 9, kind: input, shape index: {}]
  %s10 = inlined_call_operand.vmem [shape: f32[1,32], index: 10, kind: input, shape index: {}]
  %s11 = inlined_call_operand.vmem [shape: f32[1,32], index: 11, kind: input, shape index: {}]
  %s12 = inlined_call_operand.vmem [shape: f32[1,32], index: 12, kind: input, shape index: {}]
  %s13 = inlined_call_operand.hbm [shape: f32[16,32], index: 13, kind: output, shape index: {}]
  %s14 = sld [smem:[#allocation0]]
  $region78: #{tpu_custom_call.1} parent=0
    _
  %s16 = ssub.s32 1, %s14
  %s17 = scalar_select 0, %s16, %s14
  $region1: #{tpu_custom_call.1} parent=0
    #allocation2 [shape = 'u8[8192]{0}', space=vmem, size = 0x2000, scoped, tag = 'input window, operand 0, single buffered']
    #allocation3 [shape = 's32[1]{0}', space=sflag, size = 0x4, scoped, tag = 'scoped memory for tpu_custom_call.1']
    #allocation4 [shape = 's32[1]{0}', space=sflag, size = 0x4, scoped, tag = 'scoped memory for tpu_custom_call.1']
    #allocation5 [shape = 'u8[512]{0}', space=vmem, size = 0x400, scoped, tag = 'input window, operand 5, single buffered']
    #allocation6 [shape = 's32[1]{0}', space=sflag, size = 0x4, scoped, tag = 'scoped memory for tpu_custom_call.1']
    #allocation7 [shape = 'u8[512]{0}', space=vmem, size = 0x400, scoped, tag = 'input window, operand 6, single buffered']
    #allocation8 [shape = 'u8[512]{0}', space=vmem, size = 0x400, scoped, tag = 'input window, operand 8, single buffered']
    #allocation9 [shape = 's32[1]{0}', space=sflag, size = 0x4, scoped, tag = 'scoped memory for tpu_custom_call.1']
    #allocation10 [shape = 'u8[8192]{0}', space=vmem, size = 0x2000, scoped, tag = 'output window, operand 0, single buffered']
    %18 = vsyncpa [#allocation3], 0
    %19 = vsyncpa [#allocation6], 0
    %20 = vsyncpa [#allocation9], 0
    %21 = vsyncpa [#allocation4], 0
    // Predicated region
    $region2: #{tpu_custom_call.1} parent=1 // pred_check
      _
    $region3: #{tpu_custom_call.1} parent=1 // pred_check_branch
      %23 = sbr.rel (0) target = $region5
    $region4: #{tpu_custom_call.1} parent=1 // pred_region
      %s25 = ssub.s32 256, 256
      %26 = vsyncadd [#allocation3], %s25
      %s27 = sshll.u32 [#allocation2], 4
      %s28 = int_to_ptr.vmem [resolvable:$true] %s27
      %33 = dma.hbm_to_vmem [thread:$0]  %s0, 256, %s28, [#allocation3], 128, 128, 8
    $region5: #{tpu_custom_call.1} parent=1 // pred_fallthru
      _
    // Predicated region
    $region6: #{tpu_custom_call.1} parent=1 // pred_check
      _
    $region7: #{tpu_custom_call.1} parent=1 // pred_check_branch
      %35 = sbr.rel (0) target = $region9
    $region8: #{tpu_custom_call.1} parent=1 // pred_region
      _
    $region9: #{tpu_custom_call.1} parent=1 // pred_fallthru
      _
    // Predicated region
    $region10: #{tpu_custom_call.1} parent=1 // pred_check
      _
    $region11: #{tpu_custom_call.1} parent=1 // pred_check_branch
      %37 = sbr.rel (0) target = $region13
    $region12: #{tpu_custom_call.1} parent=1 // pred_region
      _
    $region13: #{tpu_custom_call.1} parent=1 // pred_fallthru
      _
    // Predicated region
    $region14: #{tpu_custom_call.1} parent=1 // pred_check
      _
    $region15: #{tpu_custom_call.1} parent=1 // pred_check_branch
      %39 = sbr.rel (0) target = $region17
    $region16: #{tpu_custom_call.1} parent=1 // pred_region
      _
    $region17: #{tpu_custom_call.1} parent=1 // pred_fallthru
      _
    // Predicated region
    $region18: #{tpu_custom_call.1} parent=1 // pred_check
      _
    $region19: #{tpu_custom_call.1} parent=1 // pred_check_branch
      %41 = sbr.rel (0) target = $region21
    $region20: #{tpu_custom_call.1} parent=1 // pred_region
      _
    $region21: #{tpu_custom_call.1} parent=1 // pred_fallthru
      _
    // Predicated region
    $region22: #{tpu_custom_call.1} parent=1 // pred_check
      _
    $region23: #{tpu_custom_call.1} parent=1 // pred_check_branch
      %43 = sbr.rel (0) target = $region25
    $region24: #{tpu_custom_call.1} parent=1 // pred_region
      %s45 = ssub.s32 16, 16
      %46 = vsyncadd [#allocation6], %s45
      %s48 = sshll.u32 [#allocation5], 4
      %s49 = int_to_ptr.vmem [resolvable:$true] %s48
      %51 = dma.hbm_to_vmem [thread:$0]  %s5, 16, %s49, [#allocation6]
    $region25: #{tpu_custom_call.1} parent=1 // pred_fallthru
      _
    // Predicated region
    $region26: #{tpu_custom_call.1} parent=1 // pred_check
      _
    $region27: #{tpu_custom_call.1} parent=1 // pred_check_branch
      %53 = sbr.rel (0) target = $region29
    $region28: #{tpu_custom_call.1} parent=1 // pred_region
      %s55 = ssub.s32 16, 16
      %56 = vsyncadd [#allocation6], %s55
      %s58 = sshll.u32 [#allocation7], 4
      %s59 = int_to_ptr.vmem [resolvable:$true] %s58
      %61 = dma.hbm_to_vmem [thread:$0]  %s6, 16, %s59, [#allocation6]
    $region29: #{tpu_custom_call.1} parent=1 // pred_fallthru
      _
    // Predicated region
    $region30: #{tpu_custom_call.1} parent=1 // pred_check
      _
    $region31: #{tpu_custom_call.1} parent=1 // pred_check_branch
      %63 = sbr.rel (0) target = $region33
    $region32: #{tpu_custom_call.1} parent=1 // pred_region
      _
    $region33: #{tpu_custom_call.1} parent=1 // pred_fallthru
      _
    // Predicated region
    $region34: #{tpu_custom_call.1} parent=1 // pred_check
      _
    $region35: #{tpu_custom_call.1} parent=1 // pred_check_branch
      %65 = sbr.rel (0) target = $region37
    $region36: #{tpu_custom_call.1} parent=1 // pred_region
      %s67 = ssub.s32 16, 16
      %68 = vsyncadd [#allocation9], %s67
      %s70 = sshll.u32 [#allocation8], 4
      %s71 = int_to_ptr.vmem [resolvable:$true] %s70
      %73 = dma.hbm_to_vmem [thread:$0]  %s8, 16, %s71, [#allocation9]
    $region37: #{tpu_custom_call.1} parent=1 // pred_fallthru
      _
    // Predicated region
    $region38: #{tpu_custom_call.1} parent=1 // pred_check
      _
    $region39: #{tpu_custom_call.1} parent=1 // pred_check_branch
      %75 = sbr.rel (0) target = $region41
    $region40: #{tpu_custom_call.1} parent=1 // pred_region
      _
    $region41: #{tpu_custom_call.1} parent=1 // pred_fallthru
      _
    // Predicated region
    $region42: #{tpu_custom_call.1} parent=1 // pred_check
      _
    $region43: #{tpu_custom_call.1} parent=1 // pred_check_branch
      %77 = sbr.rel (0) target = $region45
    $region44: #{tpu_custom_call.1} parent=1 // pred_region
      _
    $region45: #{tpu_custom_call.1} parent=1 // pred_fallthru
      _
    // Predicated region
    $region46: #{tpu_custom_call.1} parent=1 // pred_check
      _
    $region47: #{tpu_custom_call.1} parent=1 // pred_check_branch
      %79 = sbr.rel (0) target = $region49
    $region48: #{tpu_custom_call.1} parent=1 // pred_region
      _
    $region49: #{tpu_custom_call.1} parent=1 // pred_fallthru
      _
    // Predicated region
    $region50: #{tpu_custom_call.1} parent=1 // pred_check
      _
    $region51: #{tpu_custom_call.1} parent=1 // pred_check_branch
      %81 = sbr.rel (0) target = $region53
    $region52: #{tpu_custom_call.1} parent=1 // pred_region
      _
    $region53: #{tpu_custom_call.1} parent=1 // pred_fallthru
      _
    // Predicated region
    $region54: #{tpu_custom_call.1} parent=1 // pred_check
      _
    $region55: #{tpu_custom_call.1} parent=1 // pred_check_branch
      %83 = sbr.rel (0) target = $region57
    $region56: #{tpu_custom_call.1} parent=1 // pred_region
      %84 = dma.done [#allocation3], 256
    $region57: #{tpu_custom_call.1} parent=1 // pred_fallthru
      _
    // Predicated region
    $region58: #{tpu_custom_call.1} parent=1 // pred_check
      _
    $region59: #{tpu_custom_call.1} parent=1 // pred_check_branch
      %86 = sbr.rel (0) target = $region61
    $region60: #{tpu_custom_call.1} parent=1 // pred_region
      %87 = dma.done [#allocation6], 16
    $region61: #{tpu_custom_call.1} parent=1 // pred_fallthru
      _
    // Predicated region
    $region62: #{tpu_custom_call.1} parent=1 // pred_check
      _
    $region63: #{tpu_custom_call.1} parent=1 // pred_check_branch
      %89 = sbr.rel (0) target = $region65
    $region64: #{tpu_custom_call.1} parent=1 // pred_region
      %90 = dma.done [#allocation6], 16
    $region65: #{tpu_custom_call.1} parent=1 // pred_fallthru
      _
    // Predicated region
    $region66: #{tpu_custom_call.1} parent=1 // pred_check
      _
    $region67: #{tpu_custom_call.1} parent=1 // pred_check_branch
      %92 = sbr.rel (0) target = $region69
    $region68: #{tpu_custom_call.1} parent=1 // pred_region
      %93 = dma.done [#allocation9], 16
    $region69: #{tpu_custom_call.1} parent=1 // pred_fallthru
      _
    %v94 = vld [vmem:[#allocation2] sm:$0xff]
    %v95 = vld [vmem:[#allocation2 + $0x8] sm:$0xff]
    %v96 = vld [vmem:[%s1] sm:$0xff]
    %v97 = vld [vmem:[%s1 + $0x8] sm:$0xff]
    %v98 = vld [vmem:[%s1 + $0x10] sm:$0xff]
    %v99 = vld [vmem:[%s1 + $0x18] sm:$0xff]
    %v100 = vld [vmem:[%s2] sm:$0x1]
    %v102 = vlaneseq
    %v103 = vshrl.u32 %v102, 7
    %v104 = vsub.s32 0, %v103
    %v105 = vrot.slane %v100, %v104
    %vm107 = vcmask 261120
    %v109 = vsel %vm107, %v94, 0
    %v112 = vsel %vm107, %v95, 0
    %114 = vmatprep.subr.mxu0 0.0
    %115 = vmatpush1.msra.mxu0 %v96
    %116 = vmatprep.subr.mxu0 0.0
    %117 = vmatpush1.msra.mxu0 %v97
    %118 = vmatprep.subr.mxu0 0.0
    %119 = vmatpush1.msra.mxu0 %v98
    %120 = vmatprep.subr.mxu0 0.0
    %121 = vmatpush1.msra.mxu0 %v99
    %122 = vmatprep.subr.mxu0 0.0
    %123 = vmatpush1.msra.mxu0 0.0
    %124 = vmatprep.subr.mxu0 0.0
    %125 = vmatpush1.msra.mxu0 0.0
    %126 = vmatprep.subr.mxu0 0.0
    %127 = vmatpush1.msra.mxu0 0.0
    %128 = vmatprep.subr.mxu0 0.0
    %129 = vmatpush1.msra.mxu0 0.0
    %130 = vmatprep.subr.mxu0 0.0
    %131 = vmatpush1.msra.mxu0 0.0
    %132 = vmatprep.subr.mxu0 0.0
    %133 = vmatpush1.msra.mxu0 0.0
    %134 = vmatprep.subr.mxu0 0.0
    %135 = vmatpush1.msra.mxu0 0.0
    %136 = vmatprep.subr.mxu0 0.0
    %137 = vmatpush1.msra.mxu0 0.0
    %138 = vmatprep.subr.mxu0 0.0
    %139 = vmatpush1.msra.mxu0 0.0
    %140 = vmatprep.subr.mxu0 0.0
    %141 = vmatpush1.msra.mxu0 0.0
    %142 = vmatprep.subr.mxu0 0.0
    %143 = vmatpush1.msra.mxu0 0.0
    %144 = vmatprep.subr.mxu0 0.0
    %145 = vmatpush1.msra.mxu0 0.0
    %146 = vmatprep.subr.mxu0 0.0
    %147 = vmatpush1.msra.mxu0 0.0
    %148 = vmatprep.subr.mxu0 0.0
    %149 = vmatpush1.msra.mxu0 0.0
    %150 = vmatprep.subr.mxu0 0.0
    %151 = vmatpush1.msra.mxu0 0.0
    %152 = vmatprep.subr.mxu0 0.0
    %153 = vmatpush1.msra.mxu0 0.0
    %154 = vmatprep.subr.mxu0 0.0
    %155 = vmatpush1.msra.mxu0 0.0
    %156 = vmatprep.subr.mxu0 0.0
    %157 = vmatpush1.msra.mxu0 0.0
    %158 = vmatprep.subr.mxu0 0.0
    %159 = vmatpush1.msra.mxu0 0.0
    %160 = vmatprep.subr.mxu0 0.0
    %161 = vmatpush1.msra.mxu0 0.0
    %162 = vmatprep.subr.mxu0 0.0
    %163 = vmatpush1.msra.mxu0 0.0
    %164 = vmatprep.subr.mxu0 0.0
    %165 = vmatpush1.msra.mxu0 0.0
    %166 = vmatprep.subr.mxu0 0.0
    %167 = vmatpush1.msra.mxu0 0.0
    %168 = vmatprep.subr.mxu0 0.0
    %169 = vmatpush1.msra.mxu0 0.0
    %170 = vmatprep.subr.mxu0 0.0
    %171 = vmatpush1.msra.mxu0 0.0
    %172 = vmatprep.subr.mxu0 0.0
    %173 = vmatpush1.msra.mxu0 0.0
    %174 = vmatprep.subr.mxu0 0.0
    %175 = vmatpush1.msra.mxu0 0.0
    %176 = vmatprep.subr.mxu0 0.0
    %177 = vmatpush1.msra.mxu0 0.0
    %178 = vmatprep.mubr.f32.mxu0 0.0
    %179 = vmatmul.mubr.f32.gmra.mrb[0].mxu0 %v109
    %v180 = vpop.f32.mrb[0].mxu0
    %v181 = vadd.f32 %v105, %v180
    %v182 = vpop.f32.mrb[0].mxu0
    %183 = vmatprep.mubr.f32.mxu0 0.0
    %184 = vmatmul.mubr.f32.gmra.mrb[0].mxu0 %v112
    %v185 = vpop.f32.mrb[0].mxu0
    %v186 = vadd.f32 %v105, %v185
    %v187 = vpop.f32.mrb[0].mxu0
    %188 = vdwg.mxu0
    %v189 = vmul.f32 %v181, 0.35355338
    %v190 = vmul.f32 %v186, 0.35355338
    %193 = vrot.lane.b32.xlu0 %v189, 120
    %v194 = vpop.permute.xlu0 %193
    %195 = vrot.lane.b32.xlu0 %v190, 120
    %v196 = vpop.permute.xlu0 %195
    %197 = vrot.lane.b32.xlu0 %v189, 112
    %v198 = vpop.permute.xlu0 %197
    %199 = vrot.lane.b32.xlu0 %v190, 112
    %v200 = vpop.permute.xlu0 %199
    %201 = vrot.lane.b32.xlu0 %v189, 104
    %v202 = vpop.permute.xlu0 %201
    %203 = vrot.lane.b32.xlu0 %v190, 104
    %v204 = vpop.permute.xlu0 %203
    %207 = vrot.lane.b32.xlu0 %v181, 120
    %v208 = vpop.permute.xlu0 %207
    %209 = vrot.lane.b32.xlu0 %v186, 120
    %v210 = vpop.permute.xlu0 %209
    %211 = vrot.lane.b32.xlu0 %v181, 112
    %v212 = vpop.permute.xlu0 %211
    %213 = vrot.lane.b32.xlu0 %v186, 112
    %v214 = vpop.permute.xlu0 %213
    %215 = vrot.lane.b32.xlu0 %v181, 104
    %v216 = vpop.permute.xlu0 %215
    %217 = vrot.lane.b32.xlu0 %v186, 104
    %v218 = vpop.permute.xlu0 %217
    %219 = vrot.lane.b32.xlu0 %v181, 96
    %v220 = vpop.permute.xlu0 %219
    %vm221 = vcmask 64512
    %v222 = vsel %vm221, %v189, 0
    %v224 = vsel %vm221, %v220, 0
    %226 = vmatprep.subr.mxu0 0.0
    %227 = vmatpush1.xpose.msra.mxu0 %v224
    %228 = vmatprep.subr.mxu0 0.0
    %229 = vmatpush1.xpose.msra.mxu0 0.0
    %230 = vmatprep.subr.mxu0 0.0
    %231 = vmatpush1.xpose.msra.mxu0 0.0
    %232 = vmatprep.subr.mxu0 0.0
    %233 = vmatpush1.xpose.msra.mxu0 0.0
    %234 = vmatprep.subr.mxu0 0.0
    %235 = vmatpush1.xpose.msra.mxu0 0.0
    %236 = vmatprep.subr.mxu0 0.0
    %237 = vmatpush1.xpose.msra.mxu0 0.0
    %238 = vmatprep.subr.mxu0 0.0
    %239 = vmatpush1.xpose.msra.mxu0 0.0
    %240 = vmatprep.subr.mxu0 0.0
    %241 = vmatpush1.xpose.msra.mxu0 0.0
    %242 = vmatprep.subr.mxu0 0.0
    %243 = vmatpush1.xpose.msra.mxu0 0.0
    %244 = vmatprep.subr.mxu0 0.0
    %245 = vmatpush1.xpose.msra.mxu0 0.0
    %246 = vmatprep.subr.mxu0 0.0
    %247 = vmatpush1.xpose.msra.mxu0 0.0
    %248 = vmatprep.subr.mxu0 0.0
    %249 = vmatpush1.xpose.msra.mxu0 0.0
    %250 = vmatprep.subr.mxu0 0.0
    %251 = vmatpush1.xpose.msra.mxu0 0.0
    %252 = vmatprep.subr.mxu0 0.0
    %253 = vmatpush1.xpose.msra.mxu0 0.0
    %254 = vmatprep.subr.mxu0 0.0
    %255 = vmatpush1.xpose.msra.mxu0 0.0
    %256 = vmatprep.subr.mxu0 0.0
    %257 = vmatpush1.xpose.msra.mxu0 0.0
    %258 = vmatprep.subr.mxu0 0.0
    %259 = vmatpush1.xpose.msra.mxu0 0.0
    %260 = vmatprep.subr.mxu0 0.0
    %261 = vmatpush1.xpose.msra.mxu0 0.0
    %262 = vmatprep.subr.mxu0 0.0
    %263 = vmatpush1.xpose.msra.mxu0 0.0
    %264 = vmatprep.subr.mxu0 0.0
    %265 = vmatpush1.xpose.msra.mxu0 0.0
    %266 = vmatprep.subr.mxu0 0.0
    %267 = vmatpush1.xpose.msra.mxu0 0.0
    %268 = vmatprep.subr.mxu0 0.0
    %269 = vmatpush1.xpose.msra.mxu0 0.0
    %270 = vmatprep.subr.mxu0 0.0
    %271 = vmatpush1.xpose.msra.mxu0 0.0
    %272 = vmatprep.subr.mxu0 0.0
    %273 = vmatpush1.xpose.msra.mxu0 0.0
    %274 = vmatprep.subr.mxu0 0.0
    %275 = vmatpush1.xpose.msra.mxu0 0.0
    %276 = vmatprep.subr.mxu0 0.0
    %277 = vmatpush1.xpose.msra.mxu0 0.0
    %278 = vmatprep.subr.mxu0 0.0
    %279 = vmatpush1.xpose.msra.mxu0 0.0
    %280 = vmatprep.subr.mxu0 0.0
    %281 = vmatpush1.xpose.msra.mxu0 0.0
    %282 = vmatprep.subr.mxu0 0.0
    %283 = vmatpush1.xpose.msra.mxu0 0.0
    %284 = vmatprep.subr.mxu0 0.0
    %285 = vmatpush1.xpose.msra.mxu0 0.0
    %286 = vmatprep.subr.mxu0 0.0
    %287 = vmatpush1.xpose.msra.mxu0 0.0
    %288 = vmatprep.subr.mxu0 0.0
    %289 = vmatpush1.xpose.msra.mxu0 0.0
    %290 = vmatprep.mubr.f32.mxu0 0.0
    %291 = vmatmul.mubr.f32.gmra.mrb[0].mxu0 %v222
    %v292 = vpop.f32.mrb[0].mxu0
    %v293 = vadd.f32 0.0, %v292
    %v294 = vpop.f32.mrb[0].mxu0
    %295 = vdwg.mxu0
    %296 = vrot.lane.b32.xlu0 %v186, 96
    %v297 = vpop.permute.xlu0 %296
    %v298 = vsel %vm221, %v190, 0
    %v300 = vsel %vm221, %v297, 0
    %302 = vmatprep.subr.mxu0 0.0
    %303 = vmatpush1.xpose.msra.mxu0 %v300
    %304 = vmatprep.subr.mxu0 0.0
    %305 = vmatpush1.xpose.msra.mxu0 0.0
    %306 = vmatprep.subr.mxu0 0.0
    %307 = vmatpush1.xpose.msra.mxu0 0.0
    %308 = vmatprep.subr.mxu0 0.0
    %309 = vmatpush1.xpose.msra.mxu0 0.0
    %310 = vmatprep.subr.mxu0 0.0
    %311 = vmatpush1.xpose.msra.mxu0 0.0
    %312 = vmatprep.subr.mxu0 0.0
    %313 = vmatpush1.xpose.msra.mxu0 0.0
    %314 = vmatprep.subr.mxu0 0.0
    %315 = vmatpush1.xpose.msra.mxu0 0.0
    %316 = vmatprep.subr.mxu0 0.0
    %317 = vmatpush1.xpose.msra.mxu0 0.0
    %318 = vmatprep.subr.mxu0 0.0
    %319 = vmatpush1.xpose.msra.mxu0 0.0
    %320 = vmatprep.subr.mxu0 0.0
    %321 = vmatpush1.xpose.msra.mxu0 0.0
    %322 = vmatprep.subr.mxu0 0.0
    %323 = vmatpush1.xpose.msra.mxu0 0.0
    %324 = vmatprep.subr.mxu0 0.0
    %325 = vmatpush1.xpose.msra.mxu0 0.0
    %326 = vmatprep.subr.mxu0 0.0
    %327 = vmatpush1.xpose.msra.mxu0 0.0
    %328 = vmatprep.subr.mxu0 0.0
    %329 = vmatpush1.xpose.msra.mxu0 0.0
    %330 = vmatprep.subr.mxu0 0.0
    %331 = vmatpush1.xpose.msra.mxu0 0.0
    %332 = vmatprep.subr.mxu0 0.0
    %333 = vmatpush1.xpose.msra.mxu0 0.0
    %334 = vmatprep.subr.mxu0 0.0
    %335 = vmatpush1.xpose.msra.mxu0 0.0
    %336 = vmatprep.subr.mxu0 0.0
    %337 = vmatpush1.xpose.msra.mxu0 0.0
    %338 = vmatprep.subr.mxu0 0.0
    %339 = vmatpush1.xpose.msra.mxu0 0.0
    %340 = vmatprep.subr.mxu0 0.0
    %341 = vmatpush1.xpose.msra.mxu0 0.0
    %342 = vmatprep.subr.mxu0 0.0
    %343 = vmatpush1.xpose.msra.mxu0 0.0
    %344 = vmatprep.subr.mxu0 0.0
    %345 = vmatpush1.xpose.msra.mxu0 0.0
    %346 = vmatprep.subr.mxu0 0.0
    %347 = vmatpush1.xpose.msra.mxu0 0.0
    %348 = vmatprep.subr.mxu0 0.0
    %349 = vmatpush1.xpose.msra.mxu0 0.0
    %350 = vmatprep.subr.mxu0 0.0
    %351 = vmatpush1.xpose.msra.mxu0 0.0
    %352 = vmatprep.subr.mxu0 0.0
    %353 = vmatpush1.xpose.msra.mxu0 0.0
    %354 = vmatprep.subr.mxu0 0.0
    %355 = vmatpush1.xpose.msra.mxu0 0.0
    %356 = vmatprep.subr.mxu0 0.0
    %357 = vmatpush1.xpose.msra.mxu0 0.0
    %358 = vmatprep.subr.mxu0 0.0
    %359 = vmatpush1.xpose.msra.mxu0 0.0
    %360 = vmatprep.subr.mxu0 0.0
    %361 = vmatpush1.xpose.msra.mxu0 0.0
    %362 = vmatprep.subr.mxu0 0.0
    %363 = vmatpush1.xpose.msra.mxu0 0.0
    %364 = vmatprep.subr.mxu0 0.0
    %365 = vmatpush1.xpose.msra.mxu0 0.0
    %366 = vmatprep.mubr.f32.mxu0 0.0
    %367 = vmatmul.mubr.f32.gmra.mrb[0].mxu0 %v298
    %v368 = vpop.f32.mrb[0].mxu0
    %v369 = vadd.f32 0.0, %v368
    %v370 = vpop.f32.mrb[0].mxu0
    %371 = vdwg.mxu0
    %372 = vrot.lane.b32.xlu0 %v208, 96
    %v373 = vpop.permute.xlu0 %372
    %v374 = vsel %vm221, %v194, 0
    %v376 = vsel %vm221, %v373, 0
    %378 = vmatprep.subr.mxu0 0.0
    %379 = vmatpush1.xpose.msra.mxu0 %v376
    %380 = vmatprep.subr.mxu0 0.0
    %381 = vmatpush1.xpose.msra.mxu0 0.0
    %382 = vmatprep.subr.mxu0 0.0
    %383 = vmatpush1.xpose.msra.mxu0 0.0
    %384 = vmatprep.subr.mxu0 0.0
    %385 = vmatpush1.xpose.msra.mxu0 0.0
    %386 = vmatprep.subr.mxu0 0.0
    %387 = vmatpush1.xpose.msra.mxu0 0.0
    %388 = vmatprep.subr.mxu0 0.0
    %389 = vmatpush1.xpose.msra.mxu0 0.0
    %390 = vmatprep.subr.mxu0 0.0
    %391 = vmatpush1.xpose.msra.mxu0 0.0
    %392 = vmatprep.subr.mxu0 0.0
    %393 = vmatpush1.xpose.msra.mxu0 0.0
    %394 = vmatprep.subr.mxu0 0.0
    %395 = vmatpush1.xpose.msra.mxu0 0.0
    %396 = vmatprep.subr.mxu0 0.0
    %397 = vmatpush1.xpose.msra.mxu0 0.0
    %398 = vmatprep.subr.mxu0 0.0
    %399 = vmatpush1.xpose.msra.mxu0 0.0
    %400 = vmatprep.subr.mxu0 0.0
    %401 = vmatpush1.xpose.msra.mxu0 0.0
    %402 = vmatprep.subr.mxu0 0.0
    %403 = vmatpush1.xpose.msra.mxu0 0.0
    %404 = vmatprep.subr.mxu0 0.0
    %405 = vmatpush1.xpose.msra.mxu0 0.0
    %406 = vmatprep.subr.mxu0 0.0
    %407 = vmatpush1.xpose.msra.mxu0 0.0
    %408 = vmatprep.subr.mxu0 0.0
    %409 = vmatpush1.xpose.msra.mxu0 0.0
    %410 = vmatprep.subr.mxu0 0.0
    %411 = vmatpush1.xpose.msra.mxu0 0.0
    %412 = vmatprep.subr.mxu0 0.0
    %413 = vmatpush1.xpose.msra.mxu0 0.0
    %414 = vmatprep.subr.mxu0 0.0
    %415 = vmatpush1.xpose.msra.mxu0 0.0
    %416 = vmatprep.subr.mxu0 0.0
    %417 = vmatpush1.xpose.msra.mxu0 0.0
    %418 = vmatprep.subr.mxu0 0.0
    %419 = vmatpush1.xpose.msra.mxu0 0.0
    %420 = vmatprep.subr.mxu0 0.0
    %421 = vmatpush1.xpose.msra.mxu0 0.0
    %422 = vmatprep.subr.mxu0 0.0
    %423 = vmatpush1.xpose.msra.mxu0 0.0
    %424 = vmatprep.subr.mxu0 0.0
    %425 = vmatpush1.xpose.msra.mxu0 0.0
    %426 = vmatprep.subr.mxu0 0.0
    %427 = vmatpush1.xpose.msra.mxu0 0.0
    %428 = vmatprep.subr.mxu0 0.0
    %429 = vmatpush1.xpose.msra.mxu0 0.0
    %430 = vmatprep.subr.mxu0 0.0
    %431 = vmatpush1.xpose.msra.mxu0 0.0
    %432 = vmatprep.subr.mxu0 0.0
    %433 = vmatpush1.xpose.msra.mxu0 0.0
    %434 = vmatprep.subr.mxu0 0.0
    %435 = vmatpush1.xpose.msra.mxu0 0.0
    %436 = vmatprep.subr.mxu0 0.0
    %437 = vmatpush1.xpose.msra.mxu0 0.0
    %438 = vmatprep.subr.mxu0 0.0
    %439 = vmatpush1.xpose.msra.mxu0 0.0
    %440 = vmatprep.subr.mxu0 0.0
    %441 = vmatpush1.xpose.msra.mxu0 0.0
    %442 = vmatprep.mubr.f32.mxu0 0.0
    %443 = vmatmul.mubr.f32.gmra.mrb[0].mxu0 %v374
    %v444 = vpop.f32.mrb[0].mxu0
    %v445 = vadd.f32 0.0, %v444
    %v446 = vpop.f32.mrb[0].mxu0
    %447 = vdwg.mxu0
    %448 = vrot.lane.b32.xlu0 %v210, 96
    %v449 = vpop.permute.xlu0 %448
    %v450 = vsel %vm221, %v196, 0
    %v452 = vsel %vm221, %v449, 0
    %454 = vmatprep.subr.mxu0 0.0
    %455 = vmatpush1.xpose.msra.mxu0 %v452
    %456 = vmatprep.subr.mxu0 0.0
    %457 = vmatpush1.xpose.msra.mxu0 0.0
    %458 = vmatprep.subr.mxu0 0.0
    %459 = vmatpush1.xpose.msra.mxu0 0.0
    %460 = vmatprep.subr.mxu0 0.0
    %461 = vmatpush1.xpose.msra.mxu0 0.0
    %462 = vmatprep.subr.mxu0 0.0
    %463 = vmatpush1.xpose.msra.mxu0 0.0
    %464 = vmatprep.subr.mxu0 0.0
    %465 = vmatpush1.xpose.msra.mxu0 0.0
    %466 = vmatprep.subr.mxu0 0.0
    %467 = vmatpush1.xpose.msra.mxu0 0.0
    %468 = vmatprep.subr.mxu0 0.0
    %469 = vmatpush1.xpose.msra.mxu0 0.0
    %470 = vmatprep.subr.mxu0 0.0
    %471 = vmatpush1.xpose.msra.mxu0 0.0
    %472 = vmatprep.subr.mxu0 0.0
    %473 = vmatpush1.xpose.msra.mxu0 0.0
    %474 = vmatprep.subr.mxu0 0.0
    %475 = vmatpush1.xpose.msra.mxu0 0.0
    %476 = vmatprep.subr.mxu0 0.0
    %477 = vmatpush1.xpose.msra.mxu0 0.0
    %478 = vmatprep.subr.mxu0 0.0
    %479 = vmatpush1.xpose.msra.mxu0 0.0
    %480 = vmatprep.subr.mxu0 0.0
    %481 = vmatpush1.xpose.msra.mxu0 0.0
    %482 = vmatprep.subr.mxu0 0.0
    %483 = vmatpush1.xpose.msra.mxu0 0.0
    %484 = vmatprep.subr.mxu0 0.0
    %485 = vmatpush1.xpose.msra.mxu0 0.0
    %486 = vmatprep.subr.mxu0 0.0
    %487 = vmatpush1.xpose.msra.mxu0 0.0
    %488 = vmatprep.subr.mxu0 0.0
    %489 = vmatpush1.xpose.msra.mxu0 0.0
    %490 = vmatprep.subr.mxu0 0.0
    %491 = vmatpush1.xpose.msra.mxu0 0.0
    %492 = vmatprep.subr.mxu0 0.0
    %493 = vmatpush1.xpose.msra.mxu0 0.0
    %494 = vmatprep.subr.mxu0 0.0
    %495 = vmatpush1.xpose.msra.mxu0 0.0
    %496 = vmatprep.subr.mxu0 0.0
    %497 = vmatpush1.xpose.msra.mxu0 0.0
    %498 = vmatprep.subr.mxu0 0.0
    %499 = vmatpush1.xpose.msra.mxu0 0.0
    %500 = vmatprep.subr.mxu0 0.0
    %501 = vmatpush1.xpose.msra.mxu0 0.0
    %502 = vmatprep.subr.mxu0 0.0
    %503 = vmatpush1.xpose.msra.mxu0 0.0
    %504 = vmatprep.subr.mxu0 0.0
    %505 = vmatpush1.xpose.msra.mxu0 0.0
    %506 = vmatprep.subr.mxu0 0.0
    %507 = vmatpush1.xpose.msra.mxu0 0.0
    %508 = vmatprep.subr.mxu0 0.0
    %509 = vmatpush1.xpose.msra.mxu0 0.0
    %510 = vmatprep.subr.mxu0 0.0
    %511 = vmatpush1.xpose.msra.mxu0 0.0
    %512 = vmatprep.subr.mxu0 0.0
    %513 = vmatpush1.xpose.msra.mxu0 0.0
    %514 = vmatprep.subr.mxu0 0.0
    %515 = vmatpush1.xpose.msra.mxu0 0.0
    %516 = vmatprep.subr.mxu0 0.0
    %517 = vmatpush1.xpose.msra.mxu0 0.0
    %518 = vmatprep.mubr.f32.mxu0 0.0
    %519 = vmatmul.mubr.f32.gmra.mrb[0].mxu0 %v450
    %v520 = vpop.f32.mrb[0].mxu0
    %v521 = vadd.f32 0.0, %v520
    %v522 = vpop.f32.mrb[0].mxu0
    %523 = vdwg.mxu0
    %524 = vrot.lane.b32.xlu0 %v212, 96
    %v525 = vpop.permute.xlu0 %524
    %v526 = vsel %vm221, %v198, 0
    %v528 = vsel %vm221, %v525, 0
    %530 = vmatprep.subr.mxu0 0.0
    %531 = vmatpush1.xpose.msra.mxu0 %v528
    %532 = vmatprep.subr.mxu0 0.0
    %533 = vmatpush1.xpose.msra.mxu0 0.0
    %534 = vmatprep.subr.mxu0 0.0
    %535 = vmatpush1.xpose.msra.mxu0 0.0
    %536 = vmatprep.subr.mxu0 0.0
    %537 = vmatpush1.xpose.msra.mxu0 0.0
    %538 = vmatprep.subr.mxu0 0.0
    %539 = vmatpush1.xpose.msra.mxu0 0.0
    %540 = vmatprep.subr.mxu0 0.0
    %541 = vmatpush1.xpose.msra.mxu0 0.0
    %542 = vmatprep.subr.mxu0 0.0
    %543 = vmatpush1.xpose.msra.mxu0 0.0
    %544 = vmatprep.subr.mxu0 0.0
    %545 = vmatpush1.xpose.msra.mxu0 0.0
    %546 = vmatprep.subr.mxu0 0.0
    %547 = vmatpush1.xpose.msra.mxu0 0.0
    %548 = vmatprep.subr.mxu0 0.0
    %549 = vmatpush1.xpose.msra.mxu0 0.0
    %550 = vmatprep.subr.mxu0 0.0
    %551 = vmatpush1.xpose.msra.mxu0 0.0
    %552 = vmatprep.subr.mxu0 0.0
    %553 = vmatpush1.xpose.msra.mxu0 0.0
    %554 = vmatprep.subr.mxu0 0.0
    %555 = vmatpush1.xpose.msra.mxu0 0.0
    %556 = vmatprep.subr.mxu0 0.0
    %557 = vmatpush1.xpose.msra.mxu0 0.0
    %558 = vmatprep.subr.mxu0 0.0
    %559 = vmatpush1.xpose.msra.mxu0 0.0
    %560 = vmatprep.subr.mxu0 0.0
    %561 = vmatpush1.xpose.msra.mxu0 0.0
    %562 = vmatprep.subr.mxu0 0.0
    %563 = vmatpush1.xpose.msra.mxu0 0.0
    %564 = vmatprep.subr.mxu0 0.0
    %565 = vmatpush1.xpose.msra.mxu0 0.0
    %566 = vmatprep.subr.mxu0 0.0
    %567 = vmatpush1.xpose.msra.mxu0 0.0
    %568 = vmatprep.subr.mxu0 0.0
    %569 = vmatpush1.xpose.msra.mxu0 0.0
    %570 = vmatprep.subr.mxu0 0.0
    %571 = vmatpush1.xpose.msra.mxu0 0.0
    %572 = vmatprep.subr.mxu0 0.0
    %573 = vmatpush1.xpose.msra.mxu0 0.0
    %574 = vmatprep.subr.mxu0 0.0
    %575 = vmatpush1.xpose.msra.mxu0 0.0
    %576 = vmatprep.subr.mxu0 0.0
    %577 = vmatpush1.xpose.msra.mxu0 0.0
    %578 = vmatprep.subr.mxu0 0.0
    %579 = vmatpush1.xpose.msra.mxu0 0.0
    %580 = vmatprep.subr.mxu0 0.0
    %581 = vmatpush1.xpose.msra.mxu0 0.0
    %582 = vmatprep.subr.mxu0 0.0
    %583 = vmatpush1.xpose.msra.mxu0 0.0
    %584 = vmatprep.subr.mxu0 0.0
    %585 = vmatpush1.xpose.msra.mxu0 0.0
    %586 = vmatprep.subr.mxu0 0.0
    %587 = vmatpush1.xpose.msra.mxu0 0.0
    %588 = vmatprep.subr.mxu0 0.0
    %589 = vmatpush1.xpose.msra.mxu0 0.0
    %590 = vmatprep.subr.mxu0 0.0
    %591 = vmatpush1.xpose.msra.mxu0 0.0
    %592 = vmatprep.subr.mxu0 0.0
    %593 = vmatpush1.xpose.msra.mxu0 0.0
    %594 = vmatprep.mubr.f32.mxu0 0.0
    %595 = vmatmul.mubr.f32.gmra.mrb[0].mxu0 %v526
    %v596 = vpop.f32.mrb[0].mxu0
    %v597 = vadd.f32 0.0, %v596
    %v598 = vpop.f32.mrb[0].mxu0
    %599 = vdwg.mxu0
    %600 = vrot.lane.b32.xlu0 %v214, 96
    %v601 = vpop.permute.xlu0 %600
    %v602 = vsel %vm221, %v200, 0
    %v604 = vsel %vm221, %v601, 0
    %606 = vmatprep.subr.mxu0 0.0
    %607 = vmatpush1.xpose.msra.mxu0 %v604
    %608 = vmatprep.subr.mxu0 0.0
    %609 = vmatpush1.xpose.msra.mxu0 0.0
    %610 = vmatprep.subr.mxu0 0.0
    %611 = vmatpush1.xpose.msra.mxu0 0.0
    %612 = vmatprep.subr.mxu0 0.0
    %613 = vmatpush1.xpose.msra.mxu0 0.0
    %614 = vmatprep.subr.mxu0 0.0
    %615 = vmatpush1.xpose.msra.mxu0 0.0
    %616 = vmatprep.subr.mxu0 0.0
    %617 = vmatpush1.xpose.msra.mxu0 0.0
    %618 = vmatprep.subr.mxu0 0.0
    %619 = vmatpush1.xpose.msra.mxu0 0.0
    %620 = vmatprep.subr.mxu0 0.0
    %621 = vmatpush1.xpose.msra.mxu0 0.0
    %622 = vmatprep.subr.mxu0 0.0
    %623 = vmatpush1.xpose.msra.mxu0 0.0
    %624 = vmatprep.subr.mxu0 0.0
    %625 = vmatpush1.xpose.msra.mxu0 0.0
    %626 = vmatprep.subr.mxu0 0.0
    %627 = vmatpush1.xpose.msra.mxu0 0.0
    %628 = vmatprep.subr.mxu0 0.0
    %629 = vmatpush1.xpose.msra.mxu0 0.0
    %630 = vmatprep.subr.mxu0 0.0
    %631 = vmatpush1.xpose.msra.mxu0 0.0
    %632 = vmatprep.subr.mxu0 0.0
    %633 = vmatpush1.xpose.msra.mxu0 0.0
    %634 = vmatprep.subr.mxu0 0.0
    %635 = vmatpush1.xpose.msra.mxu0 0.0
    %636 = vmatprep.subr.mxu0 0.0
    %637 = vmatpush1.xpose.msra.mxu0 0.0
    %638 = vmatprep.subr.mxu0 0.0
    %639 = vmatpush1.xpose.msra.mxu0 0.0
    %640 = vmatprep.subr.mxu0 0.0
    %641 = vmatpush1.xpose.msra.mxu0 0.0
    %642 = vmatprep.subr.mxu0 0.0
    %643 = vmatpush1.xpose.msra.mxu0 0.0
    %644 = vmatprep.subr.mxu0 0.0
    %645 = vmatpush1.xpose.msra.mxu0 0.0
    %646 = vmatprep.subr.mxu0 0.0
    %647 = vmatpush1.xpose.msra.mxu0 0.0
    %648 = vmatprep.subr.mxu0 0.0
    %649 = vmatpush1.xpose.msra.mxu0 0.0
    %650 = vmatprep.subr.mxu0 0.0
    %651 = vmatpush1.xpose.msra.mxu0 0.0
    %652 = vmatprep.subr.mxu0 0.0
    %653 = vmatpush1.xpose.msra.mxu0 0.0
    %654 = vmatprep.subr.mxu0 0.0
    %655 = vmatpush1.xpose.msra.mxu0 0.0
    %656 = vmatprep.subr.mxu0 0.0
    %657 = vmatpush1.xpose.msra.mxu0 0.0
    %658 = vmatprep.subr.mxu0 0.0
    %659 = vmatpush1.xpose.msra.mxu0 0.0
    %660 = vmatprep.subr.mxu0 0.0
    %661 = vmatpush1.xpose.msra.mxu0 0.0
    %662 = vmatprep.subr.mxu0 0.0
    %663 = vmatpush1.xpose.msra.mxu0 0.0
    %664 = vmatprep.subr.mxu0 0.0
    %665 = vmatpush1.xpose.msra.mxu0 0.0
    %666 = vmatprep.subr.mxu0 0.0
    %667 = vmatpush1.xpose.msra.mxu0 0.0
    %668 = vmatprep.subr.mxu0 0.0
    %669 = vmatpush1.xpose.msra.mxu0 0.0
    %670 = vmatprep.mubr.f32.mxu0 0.0
    %671 = vmatmul.mubr.f32.gmra.mrb[0].mxu0 %v602
    %v672 = vpop.f32.mrb[0].mxu0
    %v673 = vadd.f32 0.0, %v672
    %v674 = vpop.f32.mrb[0].mxu0
    %675 = vdwg.mxu0
    %676 = vrot.lane.b32.xlu0 %v216, 96
    %v677 = vpop.permute.xlu0 %676
    %v678 = vsel %vm221, %v202, 0
    %v680 = vsel %vm221, %v677, 0
    %682 = vmatprep.subr.mxu0 0.0
    %683 = vmatpush1.xpose.msra.mxu0 %v680
    %684 = vmatprep.subr.mxu0 0.0
    %685 = vmatpush1.xpose.msra.mxu0 0.0
    %686 = vmatprep.subr.mxu0 0.0
    %687 = vmatpush1.xpose.msra.mxu0 0.0
    %688 = vmatprep.subr.mxu0 0.0
    %689 = vmatpush1.xpose.msra.mxu0 0.0
    %690 = vmatprep.subr.mxu0 0.0
    %691 = vmatpush1.xpose.msra.mxu0 0.0
    %692 = vmatprep.subr.mxu0 0.0
    %693 = vmatpush1.xpose.msra.mxu0 0.0
    %694 = vmatprep.subr.mxu0 0.0
    %695 = vmatpush1.xpose.msra.mxu0 0.0
    %696 = vmatprep.subr.mxu0 0.0
    %697 = vmatpush1.xpose.msra.mxu0 0.0
    %698 = vmatprep.subr.mxu0 0.0
    %699 = vmatpush1.xpose.msra.mxu0 0.0
    %700 = vmatprep.subr.mxu0 0.0
    %701 = vmatpush1.xpose.msra.mxu0 0.0
    %702 = vmatprep.subr.mxu0 0.0
    %703 = vmatpush1.xpose.msra.mxu0 0.0
    %704 = vmatprep.subr.mxu0 0.0
    %705 = vmatpush1.xpose.msra.mxu0 0.0
    %706 = vmatprep.subr.mxu0 0.0
    %707 = vmatpush1.xpose.msra.mxu0 0.0
    %708 = vmatprep.subr.mxu0 0.0
    %709 = vmatpush1.xpose.msra.mxu0 0.0
    %710 = vmatprep.subr.mxu0 0.0
    %711 = vmatpush1.xpose.msra.mxu0 0.0
    %712 = vmatprep.subr.mxu0 0.0
    %713 = vmatpush1.xpose.msra.mxu0 0.0
    %714 = vmatprep.subr.mxu0 0.0
    %715 = vmatpush1.xpose.msra.mxu0 0.0
    %716 = vmatprep.subr.mxu0 0.0
    %717 = vmatpush1.xpose.msra.mxu0 0.0
    %718 = vmatprep.subr.mxu0 0.0
    %719 = vmatpush1.xpose.msra.mxu0 0.0
    %720 = vmatprep.subr.mxu0 0.0
    %721 = vmatpush1.xpose.msra.mxu0 0.0
    %722 = vmatprep.subr.mxu0 0.0
    %723 = vmatpush1.xpose.msra.mxu0 0.0
    %724 = vmatprep.subr.mxu0 0.0
    %725 = vmatpush1.xpose.msra.mxu0 0.0
    %726 = vmatprep.subr.mxu0 0.0
    %727 = vmatpush1.xpose.msra.mxu0 0.0
    %728 = vmatprep.subr.mxu0 0.0
    %729 = vmatpush1.xpose.msra.mxu0 0.0
    %730 = vmatprep.subr.mxu0 0.0
    %731 = vmatpush1.xpose.msra.mxu0 0.0
    %732 = vmatprep.subr.mxu0 0.0
    %733 = vmatpush1.xpose.msra.mxu0 0.0
    %734 = vmatprep.subr.mxu0 0.0
    %735 = vmatpush1.xpose.msra.mxu0 0.0
    %736 = vmatprep.subr.mxu0 0.0
    %737 = vmatpush1.xpose.msra.mxu0 0.0
    %738 = vmatprep.subr.mxu0 0.0
    %739 = vmatpush1.xpose.msra.mxu0 0.0
    %740 = vmatprep.subr.mxu0 0.0
    %741 = vmatpush1.xpose.msra.mxu0 0.0
    %742 = vmatprep.subr.mxu0 0.0
    %743 = vmatpush1.xpose.msra.mxu0 0.0
    %744 = vmatprep.subr.mxu0 0.0
    %745 = vmatpush1.xpose.msra.mxu0 0.0
    %746 = vmatprep.mubr.f32.mxu0 0.0
    %747 = vmatmul.mubr.f32.gmra.mrb[0].mxu0 %v678
    %v748 = vpop.f32.mrb[0].mxu0
    %v749 = vadd.f32 0.0, %v748
    %v750 = vpop.f32.mrb[0].mxu0
    %751 = vdwg.mxu0
    %752 = vrot.lane.b32.xlu0 %v218, 96
    %v753 = vpop.permute.xlu0 %752
    %v754 = vsel %vm221, %v204, 0
    %v756 = vsel %vm221, %v753, 0
    %758 = vmatprep.subr.mxu0 0.0
    %759 = vmatpush1.xpose.msra.mxu0 %v756
    %760 = vmatprep.subr.mxu0 0.0
    %761 = vmatpush1.xpose.msra.mxu0 0.0
    %762 = vmatprep.subr.mxu0 0.0
    %763 = vmatpush1.xpose.msra.mxu0 0.0
    %764 = vmatprep.subr.mxu0 0.0
    %765 = vmatpush1.xpose.msra.mxu0 0.0
    %766 = vmatprep.subr.mxu0 0.0
    %767 = vmatpush1.xpose.msra.mxu0 0.0
    %768 = vmatprep.subr.mxu0 0.0
    %769 = vmatpush1.xpose.msra.mxu0 0.0
    %770 = vmatprep.subr.mxu0 0.0
    %771 = vmatpush1.xpose.msra.mxu0 0.0
    %772 = vmatprep.subr.mxu0 0.0
    %773 = vmatpush1.xpose.msra.mxu0 0.0
    %774 = vmatprep.subr.mxu0 0.0
    %775 = vmatpush1.xpose.msra.mxu0 0.0
    %776 = vmatprep.subr.mxu0 0.0
    %777 = vmatpush1.xpose.msra.mxu0 0.0
    %778 = vmatprep.subr.mxu0 0.0
    %779 = vmatpush1.xpose.msra.mxu0 0.0
    %780 = vmatprep.subr.mxu0 0.0
    %781 = vmatpush1.xpose.msra.mxu0 0.0
    %782 = vmatprep.subr.mxu0 0.0
    %783 = vmatpush1.xpose.msra.mxu0 0.0
    %784 = vmatprep.subr.mxu0 0.0
    %785 = vmatpush1.xpose.msra.mxu0 0.0
    %786 = vmatprep.subr.mxu0 0.0
    %787 = vmatpush1.xpose.msra.mxu0 0.0
    %788 = vmatprep.subr.mxu0 0.0
    %789 = vmatpush1.xpose.msra.mxu0 0.0
    %790 = vmatprep.subr.mxu0 0.0
    %791 = vmatpush1.xpose.msra.mxu0 0.0
    %792 = vmatprep.subr.mxu0 0.0
    %793 = vmatpush1.xpose.msra.mxu0 0.0
    %794 = vmatprep.subr.mxu0 0.0
    %795 = vmatpush1.xpose.msra.mxu0 0.0
    %796 = vmatprep.subr.mxu0 0.0
    %797 = vmatpush1.xpose.msra.mxu0 0.0
    %798 = vmatprep.subr.mxu0 0.0
    %799 = vmatpush1.xpose.msra.mxu0 0.0
    %800 = vmatprep.subr.mxu0 0.0
    %801 = vmatpush1.xpose.msra.mxu0 0.0
    %802 = vmatprep.subr.mxu0 0.0
    %803 = vmatpush1.xpose.msra.mxu0 0.0
    %804 = vmatprep.subr.mxu0 0.0
    %805 = vmatpush1.xpose.msra.mxu0 0.0
    %806 = vmatprep.subr.mxu0 0.0
    %807 = vmatpush1.xpose.msra.mxu0 0.0
    %808 = vmatprep.subr.mxu0 0.0
    %809 = vmatpush1.xpose.msra.mxu0 0.0
    %810 = vmatprep.subr.mxu0 0.0
    %811 = vmatpush1.xpose.msra.mxu0 0.0
    %812 = vmatprep.subr.mxu0 0.0
    %813 = vmatpush1.xpose.msra.mxu0 0.0
    %814 = vmatprep.subr.mxu0 0.0
    %815 = vmatpush1.xpose.msra.mxu0 0.0
    %816 = vmatprep.subr.mxu0 0.0
    %817 = vmatpush1.xpose.msra.mxu0 0.0
    %818 = vmatprep.subr.mxu0 0.0
    %819 = vmatpush1.xpose.msra.mxu0 0.0
    %820 = vmatprep.subr.mxu0 0.0
    %821 = vmatpush1.xpose.msra.mxu0 0.0
    %822 = vmatprep.mubr.f32.mxu0 0.0
    %823 = vmatmul.mubr.f32.gmra.mrb[0].mxu0 %v754
    %v824 = vpop.f32.mrb[0].mxu0
    %v825 = vadd.f32 0.0, %v824
    %v826 = vpop.f32.mrb[0].mxu0
    %827 = vdwg.mxu0
    %v828 = vsel %vm221, %v293, -inf
    %829 = vmax.xlane.f32.xlu0 %v828
    %v830 = vpop.xlane.xlu0 %829
    %v831 = vsel %vm221, %v369, -inf
    %832 = vmax.xlane.f32.xlu0 %v831
    %v833 = vpop.xlane.xlu0 %832
    %v834 = vsel %vm221, %v445, -inf
    %835 = vmax.xlane.f32.xlu0 %v834
    %v836 = vpop.xlane.xlu0 %835
    %v837 = vsel %vm221, %v521, -inf
    %838 = vmax.xlane.f32.xlu0 %v837
    %v839 = vpop.xlane.xlu0 %838
    %v840 = vsel %vm221, %v597, -inf
    %841 = vmax.xlane.f32.xlu0 %v840
    %v842 = vpop.xlane.xlu0 %841
    %v843 = vsel %vm221, %v673, -inf
    %844 = vmax.xlane.f32.xlu0 %v843
    %v845 = vpop.xlane.xlu0 %844
    %v846 = vsel %vm221, %v749, -inf
    %847 = vmax.xlane.f32.xlu0 %v846
    %v848 = vpop.xlane.xlu0 %847
    %v849 = vsel %vm221, %v825, -inf
    %850 = vmax.xlane.f32.xlu0 %v849
    %v851 = vpop.xlane.xlu0 %850
    %v852 = vsub.f32 %v293, %v830
    %v853 = vsub.f32 %v369, %v833
    %v854 = vsub.f32 %v445, %v836
    %v855 = vsub.f32 %v521, %v839
    %v856 = vsub.f32 %v597, %v842
    %v857 = vsub.f32 %v673, %v845
    %v858 = vsub.f32 %v749, %v848
    %v859 = vsub.f32 %v825, %v851
    %v860 = vmul.f32 %v852, 1.442695
    %v861 = vpow.pop %v860
    %v862 = vmul.f32 %v853, 1.442695
    %v863 = vpow.pop %v862
    %v864 = vmul.f32 %v854, 1.442695
    %v865 = vpow.pop %v864
    %v866 = vmul.f32 %v855, 1.442695
    %v867 = vpow.pop %v866
    %v868 = vmul.f32 %v856, 1.442695
    %v869 = vpow.pop %v868
    %v870 = vmul.f32 %v857, 1.442695
    %v871 = vpow.pop %v870
    %v872 = vmul.f32 %v858, 1.442695
    %v873 = vpow.pop %v872
    %v874 = vmul.f32 %v859, 1.442695
    %v875 = vpow.pop %v874
    %v876 = vsel %vm221, %v861, 0.0
    %877 = vadd.xlane.f32.xlu0 %v876
    %v878 = vpop.xlane.xlu0 %877
    %v879 = vsel %vm221, %v863, 0.0
    %880 = vadd.xlane.f32.xlu0 %v879
    %v881 = vpop.xlane.xlu0 %880
    %v882 = vsel %vm221, %v865, 0.0
    %883 = vadd.xlane.f32.xlu0 %v882
    %v884 = vpop.xlane.xlu0 %883
    %v885 = vsel %vm221, %v867, 0.0
    %886 = vadd.xlane.f32.xlu0 %v885
    %v887 = vpop.xlane.xlu0 %886
    %v888 = vsel %vm221, %v869, 0.0
    %889 = vadd.xlane.f32.xlu0 %v888
    %v890 = vpop.xlane.xlu0 %889
    %v891 = vsel %vm221, %v871, 0.0
    %892 = vadd.xlane.f32.xlu0 %v891
    %v893 = vpop.xlane.xlu0 %892
    %v894 = vsel %vm221, %v873, 0.0
    %895 = vadd.xlane.f32.xlu0 %v894
    %v896 = vpop.xlane.xlu0 %895
    %v897 = vsel %vm221, %v875, 0.0
    %898 = vadd.xlane.f32.xlu0 %v897
    %v899 = vpop.xlane.xlu0 %898
    %v900 = vrcp.pop %v878
    %v901 = vmul.f32 1.0, %v900
    %v902 = vrcp.pop %v881
    %v903 = vmul.f32 1.0, %v902
    %v904 = vrcp.pop %v884
    %v905 = vmul.f32 1.0, %v904
    %v906 = vrcp.pop %v887
    %v907 = vmul.f32 1.0, %v906
    %v908 = vrcp.pop %v890
    %v909 = vmul.f32 1.0, %v908
    %v910 = vrcp.pop %v893
    %v911 = vmul.f32 1.0, %v910
    %v912 = vrcp.pop %v896
    %v913 = vmul.f32 1.0, %v912
    %v914 = vrcp.pop %v899
    %v915 = vmul.f32 1.0, %v914
    %v916 = vmul.f32 %v861, %v901
    %v917 = vmul.f32 %v863, %v903
    %v918 = vmul.f32 %v865, %v905
    %v919 = vmul.f32 %v867, %v907
    %v920 = vmul.f32 %v869, %v909
    %v921 = vmul.f32 %v871, %v911
    %v922 = vmul.f32 %v873, %v913
    %v923 = vmul.f32 %v875, %v915
    %924 = vrot.lane.b32.xlu0 %v181, 64
    %v925 = vpop.permute.xlu0 %924
    %v928 = vsel %vm221, %v916, 0
    %930 = vmatprep.subr.mxu0 0.0
    %931 = vmatpush1.msra.mxu0 %v925
    %932 = vmatprep.subr.mxu0 0.0
    %933 = vmatpush1.msra.mxu0 0.0
    %934 = vmatprep.subr.mxu0 0.0
    %935 = vmatpush1.msra.mxu0 0.0
    %936 = vmatprep.subr.mxu0 0.0
    %937 = vmatpush1.msra.mxu0 0.0
    %938 = vmatprep.subr.mxu0 0.0
    %939 = vmatpush1.msra.mxu0 0.0
    %940 = vmatprep.subr.mxu0 0.0
    %941 = vmatpush1.msra.mxu0 0.0
    %942 = vmatprep.subr.mxu0 0.0
    %943 = vmatpush1.msra.mxu0 0.0
    %944 = vmatprep.subr.mxu0 0.0
    %945 = vmatpush1.msra.mxu0 0.0
    %946 = vmatprep.subr.mxu0 0.0
    %947 = vmatpush1.msra.mxu0 0.0
    %948 = vmatprep.subr.mxu0 0.0
    %949 = vmatpush1.msra.mxu0 0.0
    %950 = vmatprep.subr.mxu0 0.0
    %951 = vmatpush1.msra.mxu0 0.0
    %952 = vmatprep.subr.mxu0 0.0
    %953 = vmatpush1.msra.mxu0 0.0
    %954 = vmatprep.subr.mxu0 0.0
    %955 = vmatpush1.msra.mxu0 0.0
    %956 = vmatprep.subr.mxu0 0.0
    %957 = vmatpush1.msra.mxu0 0.0
    %958 = vmatprep.subr.mxu0 0.0
    %959 = vmatpush1.msra.mxu0 0.0
    %960 = vmatprep.subr.mxu0 0.0
    %961 = vmatpush1.msra.mxu0 0.0
    %962 = vmatprep.subr.mxu0 0.0
    %963 = vmatpush1.msra.mxu0 0.0
    %964 = vmatprep.subr.mxu0 0.0
    %965 = vmatpush1.msra.mxu0 0.0
    %966 = vmatprep.subr.mxu0 0.0
    %967 = vmatpush1.msra.mxu0 0.0
    %968 = vmatprep.subr.mxu0 0.0
    %969 = vmatpush1.msra.mxu0 0.0
    %970 = vmatprep.subr.mxu0 0.0
    %971 = vmatpush1.msra.mxu0 0.0
    %972 = vmatprep.subr.mxu0 0.0
    %973 = vmatpush1.msra.mxu0 0.0
    %974 = vmatprep.subr.mxu0 0.0
    %975 = vmatpush1.msra.mxu0 0.0
    %976 = vmatprep.subr.mxu0 0.0
    %977 = vmatpush1.msra.mxu0 0.0
    %978 = vmatprep.subr.mxu0 0.0
    %979 = vmatpush1.msra.mxu0 0.0
    %980 = vmatprep.subr.mxu0 0.0
    %981 = vmatpush1.msra.mxu0 0.0
    %982 = vmatprep.subr.mxu0 0.0
    %983 = vmatpush1.msra.mxu0 0.0
    %984 = vmatprep.subr.mxu0 0.0
    %985 = vmatpush1.msra.mxu0 0.0
    %986 = vmatprep.subr.mxu0 0.0
    %987 = vmatpush1.msra.mxu0 0.0
    %988 = vmatprep.subr.mxu0 0.0
    %989 = vmatpush1.msra.mxu0 0.0
    %990 = vmatprep.subr.mxu0 0.0
    %991 = vmatpush1.msra.mxu0 0.0
    %992 = vmatprep.subr.mxu0 0.0
    %993 = vmatpush1.msra.mxu0 0.0
    %994 = vmatprep.mubr.f32.mxu0 0.0
    %995 = vmatmul.mubr.f32.gmra.mrb[0].mxu0 %v928
    %v996 = vpop.f32.mrb[0].mxu0
    %v997 = vadd.f32 0.0, %v996
    %v998 = vpop.f32.mrb[0].mxu0
    %999 = vdwg.mxu0
    %1000 = vrot.lane.b32.xlu0 %v186, 64
    %v1001 = vpop.permute.xlu0 %1000
    %v1004 = vsel %vm221, %v917, 0
    %1006 = vmatprep.subr.mxu0 0.0
    %1007 = vmatpush1.msra.mxu0 %v1001
    %1008 = vmatprep.subr.mxu0 0.0
    %1009 = vmatpush1.msra.mxu0 0.0
    %1010 = vmatprep.subr.mxu0 0.0
    %1011 = vmatpush1.msra.mxu0 0.0
    %1012 = vmatprep.subr.mxu0 0.0
    %1013 = vmatpush1.msra.mxu0 0.0
    %1014 = vmatprep.subr.mxu0 0.0
    %1015 = vmatpush1.msra.mxu0 0.0
    %1016 = vmatprep.subr.mxu0 0.0
    %1017 = vmatpush1.msra.mxu0 0.0
    %1018 = vmatprep.subr.mxu0 0.0
    %1019 = vmatpush1.msra.mxu0 0.0
    %1020 = vmatprep.subr.mxu0 0.0
    %1021 = vmatpush1.msra.mxu0 0.0
    %1022 = vmatprep.subr.mxu0 0.0
    %1023 = vmatpush1.msra.mxu0 0.0
    %1024 = vmatprep.subr.mxu0 0.0
    %1025 = vmatpush1.msra.mxu0 0.0
    %1026 = vmatprep.subr.mxu0 0.0
    %1027 = vmatpush1.msra.mxu0 0.0
    %1028 = vmatprep.subr.mxu0 0.0
    %1029 = vmatpush1.msra.mxu0 0.0
    %1030 = vmatprep.subr.mxu0 0.0
    %1031 = vmatpush1.msra.mxu0 0.0
    %1032 = vmatprep.subr.mxu0 0.0
    %1033 = vmatpush1.msra.mxu0 0.0
    %1034 = vmatprep.subr.mxu0 0.0
    %1035 = vmatpush1.msra.mxu0 0.0
    %1036 = vmatprep.subr.mxu0 0.0
    %1037 = vmatpush1.msra.mxu0 0.0
    %1038 = vmatprep.subr.mxu0 0.0
    %1039 = vmatpush1.msra.mxu0 0.0
    %1040 = vmatprep.subr.mxu0 0.0
    %1041 = vmatpush1.msra.mxu0 0.0
    %1042 = vmatprep.subr.mxu0 0.0
    %1043 = vmatpush1.msra.mxu0 0.0
    %1044 = vmatprep.subr.mxu0 0.0
    %1045 = vmatpush1.msra.mxu0 0.0
    %1046 = vmatprep.subr.mxu0 0.0
    %1047 = vmatpush1.msra.mxu0 0.0
    %1048 = vmatprep.subr.mxu0 0.0
    %1049 = vmatpush1.msra.mxu0 0.0
    %1050 = vmatprep.subr.mxu0 0.0
    %1051 = vmatpush1.msra.mxu0 0.0
    %1052 = vmatprep.subr.mxu0 0.0
    %1053 = vmatpush1.msra.mxu0 0.0
    %1054 = vmatprep.subr.mxu0 0.0
    %1055 = vmatpush1.msra.mxu0 0.0
    %1056 = vmatprep.subr.mxu0 0.0
    %1057 = vmatpush1.msra.mxu0 0.0
    %1058 = vmatprep.subr.mxu0 0.0
    %1059 = vmatpush1.msra.mxu0 0.0
    %1060 = vmatprep.subr.mxu0 0.0
    %1061 = vmatpush1.msra.mxu0 0.0
    %1062 = vmatprep.subr.mxu0 0.0
    %1063 = vmatpush1.msra.mxu0 0.0
    %1064 = vmatprep.subr.mxu0 0.0
    %1065 = vmatpush1.msra.mxu0 0.0
    %1066 = vmatprep.subr.mxu0 0.0
    %1067 = vmatpush1.msra.mxu0 0.0
    %1068 = vmatprep.subr.mxu0 0.0
    %1069 = vmatpush1.msra.mxu0 0.0
    %1070 = vmatprep.mubr.f32.mxu0 0.0
    %1071 = vmatmul.mubr.f32.gmra.mrb[0].mxu0 %v1004
    %v1072 = vpop.f32.mrb[0].mxu0
    %v1073 = vadd.f32 0.0, %v1072
    %v1074 = vpop.f32.mrb[0].mxu0
    %1075 = vdwg.mxu0
    %1076 = vrot.lane.b32.xlu0 %v208, 64
    %v1077 = vpop.permute.xlu0 %1076
    %v1080 = vsel %vm221, %v918, 0
    %1082 = vmatprep.subr.mxu0 0.0
    %1083 = vmatpush1.msra.mxu0 %v1077
    %1084 = vmatprep.subr.mxu0 0.0
    %1085 = vmatpush1.msra.mxu0 0.0
    %1086 = vmatprep.subr.mxu0 0.0
    %1087 = vmatpush1.msra.mxu0 0.0
    %1088 = vmatprep.subr.mxu0 0.0
    %1089 = vmatpush1.msra.mxu0 0.0
    %1090 = vmatprep.subr.mxu0 0.0
    %1091 = vmatpush1.msra.mxu0 0.0
    %1092 = vmatprep.subr.mxu0 0.0
    %1093 = vmatpush1.msra.mxu0 0.0
    %1094 = vmatprep.subr.mxu0 0.0
    %1095 = vmatpush1.msra.mxu0 0.0
    %1096 = vmatprep.subr.mxu0 0.0
    %1097 = vmatpush1.msra.mxu0 0.0
    %1098 = vmatprep.subr.mxu0 0.0
    %1099 = vmatpush1.msra.mxu0 0.0
    %1100 = vmatprep.subr.mxu0 0.0
    %1101 = vmatpush1.msra.mxu0 0.0
    %1102 = vmatprep.subr.mxu0 0.0
    %1103 = vmatpush1.msra.mxu0 0.0
    %1104 = vmatprep.subr.mxu0 0.0
    %1105 = vmatpush1.msra.mxu0 0.0
    %1106 = vmatprep.subr.mxu0 0.0
    %1107 = vmatpush1.msra.mxu0 0.0
    %1108 = vmatprep.subr.mxu0 0.0
    %1109 = vmatpush1.msra.mxu0 0.0
    %1110 = vmatprep.subr.mxu0 0.0
    %1111 = vmatpush1.msra.mxu0 0.0
    %1112 = vmatprep.subr.mxu0 0.0
    %1113 = vmatpush1.msra.mxu0 0.0
    %1114 = vmatprep.subr.mxu0 0.0
    %1115 = vmatpush1.msra.mxu0 0.0
    %1116 = vmatprep.subr.mxu0 0.0
    %1117 = vmatpush1.msra.mxu0 0.0
    %1118 = vmatprep.subr.mxu0 0.0
    %1119 = vmatpush1.msra.mxu0 0.0
    %1120 = vmatprep.subr.mxu0 0.0
    %1121 = vmatpush1.msra.mxu0 0.0
    %1122 = vmatprep.subr.mxu0 0.0
    %1123 = vmatpush1.msra.mxu0 0.0
    %1124 = vmatprep.subr.mxu0 0.0
    %1125 = vmatpush1.msra.mxu0 0.0
    %1126 = vmatprep.subr.mxu0 0.0
    %1127 = vmatpush1.msra.mxu0 0.0
    %1128 = vmatprep.subr.mxu0 0.0
    %1129 = vmatpush1.msra.mxu0 0.0
    %1130 = vmatprep.subr.mxu0 0.0
    %1131 = vmatpush1.msra.mxu0 0.0
    %1132 = vmatprep.subr.mxu0 0.0
    %1133 = vmatpush1.msra.mxu0 0.0
    %1134 = vmatprep.subr.mxu0 0.0
    %1135 = vmatpush1.msra.mxu0 0.0
    %1136 = vmatprep.subr.mxu0 0.0
    %1137 = vmatpush1.msra.mxu0 0.0
    %1138 = vmatprep.subr.mxu0 0.0
    %1139 = vmatpush1.msra.mxu0 0.0
    %1140 = vmatprep.subr.mxu0 0.0
    %1141 = vmatpush1.msra.mxu0 0.0
    %1142 = vmatprep.subr.mxu0 0.0
    %1143 = vmatpush1.msra.mxu0 0.0
    %1144 = vmatprep.subr.mxu0 0.0
    %1145 = vmatpush1.msra.mxu0 0.0
    %1146 = vmatprep.mubr.f32.mxu0 0.0
    %1147 = vmatmul.mubr.f32.gmra.mrb[0].mxu0 %v1080
    %v1148 = vpop.f32.mrb[0].mxu0
    %v1149 = vadd.f32 0.0, %v1148
    %v1150 = vpop.f32.mrb[0].mxu0
    %1151 = vdwg.mxu0
    %1152 = vrot.lane.b32.xlu0 %v210, 64
    %v1153 = vpop.permute.xlu0 %1152
    %v1156 = vsel %vm221, %v919, 0
    %1158 = vmatprep.subr.mxu0 0.0
    %1159 = vmatpush1.msra.mxu0 %v1153
    %1160 = vmatprep.subr.mxu0 0.0
    %1161 = vmatpush1.msra.mxu0 0.0
    %1162 = vmatprep.subr.mxu0 0.0
    %1163 = vmatpush1.msra.mxu0 0.0
    %1164 = vmatprep.subr.mxu0 0.0
    %1165 = vmatpush1.msra.mxu0 0.0
    %1166 = vmatprep.subr.mxu0 0.0
    %1167 = vmatpush1.msra.mxu0 0.0
    %1168 = vmatprep.subr.mxu0 0.0
    %1169 = vmatpush1.msra.mxu0 0.0
    %1170 = vmatprep.subr.mxu0 0.0
    %1171 = vmatpush1.msra.mxu0 0.0
    %1172 = vmatprep.subr.mxu0 0.0
    %1173 = vmatpush1.msra.mxu0 0.0
    %1174 = vmatprep.subr.mxu0 0.0
    %1175 = vmatpush1.msra.mxu0 0.0
    %1176 = vmatprep.subr.mxu0 0.0
    %1177 = vmatpush1.msra.mxu0 0.0
    %1178 = vmatprep.subr.mxu0 0.0
    %1179 = vmatpush1.msra.mxu0 0.0
    %1180 = vmatprep.subr.mxu0 0.0
    %1181 = vmatpush1.msra.mxu0 0.0
    %1182 = vmatprep.subr.mxu0 0.0
    %1183 = vmatpush1.msra.mxu0 0.0
    %1184 = vmatprep.subr.mxu0 0.0
    %1185 = vmatpush1.msra.mxu0 0.0
    %1186 = vmatprep.subr.mxu0 0.0
    %1187 = vmatpush1.msra.mxu0 0.0
    %1188 = vmatprep.subr.mxu0 0.0
    %1189 = vmatpush1.msra.mxu0 0.0
    %1190 = vmatprep.subr.mxu0 0.0
    %1191 = vmatpush1.msra.mxu0 0.0
    %1192 = vmatprep.subr.mxu0 0.0
    %1193 = vmatpush1.msra.mxu0 0.0
    %1194 = vmatprep.subr.mxu0 0.0
    %1195 = vmatpush1.msra.mxu0 0.0
    %1196 = vmatprep.subr.mxu0 0.0
    %1197 = vmatpush1.msra.mxu0 0.0
    %1198 = vmatprep.subr.mxu0 0.0
    %1199 = vmatpush1.msra.mxu0 0.0
    %1200 = vmatprep.subr.mxu0 0.0
    %1201 = vmatpush1.msra.mxu0 0.0
    %1202 = vmatprep.subr.mxu0 0.0
    %1203 = vmatpush1.msra.mxu0 0.0
    %1204 = vmatprep.subr.mxu0 0.0
    %1205 = vmatpush1.msra.mxu0 0.0
    %1206 = vmatprep.subr.mxu0 0.0
    %1207 = vmatpush1.msra.mxu0 0.0
    %1208 = vmatprep.subr.mxu0 0.0
    %1209 = vmatpush1.msra.mxu0 0.0
    %1210 = vmatprep.subr.mxu0 0.0
    %1211 = vmatpush1.msra.mxu0 0.0
    %1212 = vmatprep.subr.mxu0 0.0
    %1213 = vmatpush1.msra.mxu0 0.0
    %1214 = vmatprep.subr.mxu0 0.0
    %1215 = vmatpush1.msra.mxu0 0.0
    %1216 = vmatprep.subr.mxu0 0.0
    %1217 = vmatpush1.msra.mxu0 0.0
    %1218 = vmatprep.subr.mxu0 0.0
    %1219 = vmatpush1.msra.mxu0 0.0
    %1220 = vmatprep.subr.mxu0 0.0
    %1221 = vmatpush1.msra.mxu0 0.0
    %1222 = vmatprep.mubr.f32.mxu0 0.0
    %1223 = vmatmul.mubr.f32.gmra.mrb[0].mxu0 %v1156
    %v1224 = vpop.f32.mrb[0].mxu0
    %v1225 = vadd.f32 0.0, %v1224
    %v1226 = vpop.f32.mrb[0].mxu0
    %1227 = vdwg.mxu0
    %1228 = vrot.lane.b32.xlu0 %v212, 64
    %v1229 = vpop.permute.xlu0 %1228
    %v1232 = vsel %vm221, %v920, 0
    %1234 = vmatprep.subr.mxu0 0.0
    %1235 = vmatpush1.msra.mxu0 %v1229
    %1236 = vmatprep.subr.mxu0 0.0
    %1237 = vmatpush1.msra.mxu0 0.0
    %1238 = vmatprep.subr.mxu0 0.0
    %1239 = vmatpush1.msra.mxu0 0.0
    %1240 = vmatprep.subr.mxu0 0.0
    %1241 = vmatpush1.msra.mxu0 0.0
    %1242 = vmatprep.subr.mxu0 0.0
    %1243 = vmatpush1.msra.mxu0 0.0
    %1244 = vmatprep.subr.mxu0 0.0
    %1245 = vmatpush1.msra.mxu0 0.0
    %1246 = vmatprep.subr.mxu0 0.0
    %1247 = vmatpush1.msra.mxu0 0.0
    %1248 = vmatprep.subr.mxu0 0.0
    %1249 = vmatpush1.msra.mxu0 0.0
    %1250 = vmatprep.subr.mxu0 0.0
    %1251 = vmatpush1.msra.mxu0 0.0
    %1252 = vmatprep.subr.mxu0 0.0
    %1253 = vmatpush1.msra.mxu0 0.0
    %1254 = vmatprep.subr.mxu0 0.0
    %1255 = vmatpush1.msra.mxu0 0.0
    %1256 = vmatprep.subr.mxu0 0.0
    %1257 = vmatpush1.msra.mxu0 0.0
    %1258 = vmatprep.subr.mxu0 0.0
    %1259 = vmatpush1.msra.mxu0 0.0
    %1260 = vmatprep.subr.mxu0 0.0
    %1261 = vmatpush1.msra.mxu0 0.0
    %1262 = vmatprep.subr.mxu0 0.0
    %1263 = vmatpush1.msra.mxu0 0.0
    %1264 = vmatprep.subr.mxu0 0.0
    %1265 = vmatpush1.msra.mxu0 0.0
    %1266 = vmatprep.subr.mxu0 0.0
    %1267 = vmatpush1.msra.mxu0 0.0
    %1268 = vmatprep.subr.mxu0 0.0
    %1269 = vmatpush1.msra.mxu0 0.0
    %1270 = vmatprep.subr.mxu0 0.0
    %1271 = vmatpush1.msra.mxu0 0.0
    %1272 = vmatprep.subr.mxu0 0.0
    %1273 = vmatpush1.msra.mxu0 0.0
    %1274 = vmatprep.subr.mxu0 0.0
    %1275 = vmatpush1.msra.mxu0 0.0
    %1276 = vmatprep.subr.mxu0 0.0
    %1277 = vmatpush1.msra.mxu0 0.0
    %1278 = vmatprep.subr.mxu0 0.0
    %1279 = vmatpush1.msra.mxu0 0.0
    %1280 = vmatprep.subr.mxu0 0.0
    %1281 = vmatpush1.msra.mxu0 0.0
    %1282 = vmatprep.subr.mxu0 0.0
    %1283 = vmatpush1.msra.mxu0 0.0
    %1284 = vmatprep.subr.mxu0 0.0
    %1285 = vmatpush1.msra.mxu0 0.0
    %1286 = vmatprep.subr.mxu0 0.0
    %1287 = vmatpush1.msra.mxu0 0.0
    %1288 = vmatprep.subr.mxu0 0.0
    %1289 = vmatpush1.msra.mxu0 0.0
    %1290 = vmatprep.subr.mxu0 0.0
    %1291 = vmatpush1.msra.mxu0 0.0
    %1292 = vmatprep.subr.mxu0 0.0
    %1293 = vmatpush1.msra.mxu0 0.0
    %1294 = vmatprep.subr.mxu0 0.0
    %1295 = vmatpush1.msra.mxu0 0.0
    %1296 = vmatprep.subr.mxu0 0.0
    %1297 = vmatpush1.msra.mxu0 0.0
    %1298 = vmatprep.mubr.f32.mxu0 0.0
    %1299 = vmatmul.mubr.f32.gmra.mrb[0].mxu0 %v1232
    %v1300 = vpop.f32.mrb[0].mxu0
    %v1301 = vadd.f32 0.0, %v1300
    %v1302 = vpop.f32.mrb[0].mxu0
    %1303 = vdwg.mxu0
    %1304 = vrot.lane.b32.xlu0 %v214, 64
    %v1305 = vpop.permute.xlu0 %1304
    %v1308 = vsel %vm221, %v921, 0
    %1310 = vmatprep.subr.mxu0 0.0
    %1311 = vmatpush1.msra.mxu0 %v1305
    %1312 = vmatprep.subr.mxu0 0.0
    %1313 = vmatpush1.msra.mxu0 0.0
    %1314 = vmatprep.subr.mxu0 0.0
    %1315 = vmatpush1.msra.mxu0 0.0
    %1316 = vmatprep.subr.mxu0 0.0
    %1317 = vmatpush1.msra.mxu0 0.0
    %1318 = vmatprep.subr.mxu0 0.0
    %1319 = vmatpush1.msra.mxu0 0.0
    %1320 = vmatprep.subr.mxu0 0.0
    %1321 = vmatpush1.msra.mxu0 0.0
    %1322 = vmatprep.subr.mxu0 0.0
    %1323 = vmatpush1.msra.mxu0 0.0
    %1324 = vmatprep.subr.mxu0 0.0
    %1325 = vmatpush1.msra.mxu0 0.0
    %1326 = vmatprep.subr.mxu0 0.0
    %1327 = vmatpush1.msra.mxu0 0.0
    %1328 = vmatprep.subr.mxu0 0.0
    %1329 = vmatpush1.msra.mxu0 0.0
    %1330 = vmatprep.subr.mxu0 0.0
    %1331 = vmatpush1.msra.mxu0 0.0
    %1332 = vmatprep.subr.mxu0 0.0
    %1333 = vmatpush1.msra.mxu0 0.0
    %1334 = vmatprep.subr.mxu0 0.0
    %1335 = vmatpush1.msra.mxu0 0.0
    %1336 = vmatprep.subr.mxu0 0.0
    %1337 = vmatpush1.msra.mxu0 0.0
    %1338 = vmatprep.subr.mxu0 0.0
    %1339 = vmatpush1.msra.mxu0 0.0
    %1340 = vmatprep.subr.mxu0 0.0
    %1341 = vmatpush1.msra.mxu0 0.0
    %1342 = vmatprep.subr.mxu0 0.0
    %1343 = vmatpush1.msra.mxu0 0.0
    %1344 = vmatprep.subr.mxu0 0.0
    %1345 = vmatpush1.msra.mxu0 0.0
    %1346 = vmatprep.subr.mxu0 0.0
    %1347 = vmatpush1.msra.mxu0 0.0
    %1348 = vmatprep.subr.mxu0 0.0
    %1349 = vmatpush1.msra.mxu0 0.0
    %1350 = vmatprep.subr.mxu0 0.0
    %1351 = vmatpush1.msra.mxu0 0.0
    %1352 = vmatprep.subr.mxu0 0.0
    %1353 = vmatpush1.msra.mxu0 0.0
    %1354 = vmatprep.subr.mxu0 0.0
    %1355 = vmatpush1.msra.mxu0 0.0
    %1356 = vmatprep.subr.mxu0 0.0
    %1357 = vmatpush1.msra.mxu0 0.0
    %1358 = vmatprep.subr.mxu0 0.0
    %1359 = vmatpush1.msra.mxu0 0.0
    %1360 = vmatprep.subr.mxu0 0.0
    %1361 = vmatpush1.msra.mxu0 0.0
    %1362 = vmatprep.subr.mxu0 0.0
    %1363 = vmatpush1.msra.mxu0 0.0
    %1364 = vmatprep.subr.mxu0 0.0
    %1365 = vmatpush1.msra.mxu0 0.0
    %1366 = vmatprep.subr.mxu0 0.0
    %1367 = vmatpush1.msra.mxu0 0.0
    %1368 = vmatprep.subr.mxu0 0.0
    %1369 = vmatpush1.msra.mxu0 0.0
    %1370 = vmatprep.subr.mxu0 0.0
    %1371 = vmatpush1.msra.mxu0 0.0
    %1372 = vmatprep.subr.mxu0 0.0
    %1373 = vmatpush1.msra.mxu0 0.0
    %1374 = vmatprep.mubr.f32.mxu0 0.0
    %1375 = vmatmul.mubr.f32.gmra.mrb[0].mxu0 %v1308
    %v1376 = vpop.f32.mrb[0].mxu0
    %v1377 = vadd.f32 0.0, %v1376
    %v1378 = vpop.f32.mrb[0].mxu0
    %1379 = vdwg.mxu0
    %1380 = vrot.lane.b32.xlu0 %v216, 64
    %v1381 = vpop.permute.xlu0 %1380
    %v1384 = vsel %vm221, %v922, 0
    %1386 = vmatprep.subr.mxu0 0.0
    %1387 = vmatpush1.msra.mxu0 %v1381
    %1388 = vmatprep.subr.mxu0 0.0
    %1389 = vmatpush1.msra.mxu0 0.0
    %1390 = vmatprep.subr.mxu0 0.0
    %1391 = vmatpush1.msra.mxu0 0.0
    %1392 = vmatprep.subr.mxu0 0.0
    %1393 = vmatpush1.msra.mxu0 0.0
    %1394 = vmatprep.subr.mxu0 0.0
    %1395 = vmatpush1.msra.mxu0 0.0
    %1396 = vmatprep.subr.mxu0 0.0
    %1397 = vmatpush1.msra.mxu0 0.0
    %1398 = vmatprep.subr.mxu0 0.0
    %1399 = vmatpush1.msra.mxu0 0.0
    %1400 = vmatprep.subr.mxu0 0.0
    %1401 = vmatpush1.msra.mxu0 0.0
    %1402 = vmatprep.subr.mxu0 0.0
    %1403 = vmatpush1.msra.mxu0 0.0
    %1404 = vmatprep.subr.mxu0 0.0
    %1405 = vmatpush1.msra.mxu0 0.0
    %1406 = vmatprep.subr.mxu0 0.0
    %1407 = vmatpush1.msra.mxu0 0.0
    %1408 = vmatprep.subr.mxu0 0.0
    %1409 = vmatpush1.msra.mxu0 0.0
    %1410 = vmatprep.subr.mxu0 0.0
    %1411 = vmatpush1.msra.mxu0 0.0
    %1412 = vmatprep.subr.mxu0 0.0
    %1413 = vmatpush1.msra.mxu0 0.0
    %1414 = vmatprep.subr.mxu0 0.0
    %1415 = vmatpush1.msra.mxu0 0.0
    %1416 = vmatprep.subr.mxu0 0.0
    %1417 = vmatpush1.msra.mxu0 0.0
    %1418 = vmatprep.subr.mxu0 0.0
    %1419 = vmatpush1.msra.mxu0 0.0
    %1420 = vmatprep.subr.mxu0 0.0
    %1421 = vmatpush1.msra.mxu0 0.0
    %1422 = vmatprep.subr.mxu0 0.0
    %1423 = vmatpush1.msra.mxu0 0.0
    %1424 = vmatprep.subr.mxu0 0.0
    %1425 = vmatpush1.msra.mxu0 0.0
    %1426 = vmatprep.subr.mxu0 0.0
    %1427 = vmatpush1.msra.mxu0 0.0
    %1428 = vmatprep.subr.mxu0 0.0
    %1429 = vmatpush1.msra.mxu0 0.0
    %1430 = vmatprep.subr.mxu0 0.0
    %1431 = vmatpush1.msra.mxu0 0.0
    %1432 = vmatprep.subr.mxu0 0.0
    %1433 = vmatpush1.msra.mxu0 0.0
    %1434 = vmatprep.subr.mxu0 0.0
    %1435 = vmatpush1.msra.mxu0 0.0
    %1436 = vmatprep.subr.mxu0 0.0
    %1437 = vmatpush1.msra.mxu0 0.0
    %1438 = vmatprep.subr.mxu0 0.0
    %1439 = vmatpush1.msra.mxu0 0.0
    %1440 = vmatprep.subr.mxu0 0.0
    %1441 = vmatpush1.msra.mxu0 0.0
    %1442 = vmatprep.subr.mxu0 0.0
    %1443 = vmatpush1.msra.mxu0 0.0
    %1444 = vmatprep.subr.mxu0 0.0
    %1445 = vmatpush1.msra.mxu0 0.0
    %1446 = vmatprep.subr.mxu0 0.0
    %1447 = vmatpush1.msra.mxu0 0.0
    %1448 = vmatprep.subr.mxu0 0.0
    %1449 = vmatpush1.msra.mxu0 0.0
    %1450 = vmatprep.mubr.f32.mxu0 0.0
    %1451 = vmatmul.mubr.f32.gmra.mrb[0].mxu0 %v1384
    %v1452 = vpop.f32.mrb[0].mxu0
    %v1453 = vadd.f32 0.0, %v1452
    %v1454 = vpop.f32.mrb[0].mxu0
    %1455 = vdwg.mxu0
    %1456 = vrot.lane.b32.xlu0 %v218, 64
    %v1457 = vpop.permute.xlu0 %1456
    %v1460 = vsel %vm221, %v923, 0
    %1462 = vmatprep.subr.mxu0 0.0
    %1463 = vmatpush1.msra.mxu0 %v1457
    %1464 = vmatprep.subr.mxu0 0.0
    %1465 = vmatpush1.msra.mxu0 0.0
    %1466 = vmatprep.subr.mxu0 0.0
    %1467 = vmatpush1.msra.mxu0 0.0
    %1468 = vmatprep.subr.mxu0 0.0
    %1469 = vmatpush1.msra.mxu0 0.0
    %1470 = vmatprep.subr.mxu0 0.0
    %1471 = vmatpush1.msra.mxu0 0.0
    %1472 = vmatprep.subr.mxu0 0.0
    %1473 = vmatpush1.msra.mxu0 0.0
    %1474 = vmatprep.subr.mxu0 0.0
    %1475 = vmatpush1.msra.mxu0 0.0
    %1476 = vmatprep.subr.mxu0 0.0
    %1477 = vmatpush1.msra.mxu0 0.0
    %1478 = vmatprep.subr.mxu0 0.0
    %1479 = vmatpush1.msra.mxu0 0.0
    %1480 = vmatprep.subr.mxu0 0.0
    %1481 = vmatpush1.msra.mxu0 0.0
    %1482 = vmatprep.subr.mxu0 0.0
    %1483 = vmatpush1.msra.mxu0 0.0
    %1484 = vmatprep.subr.mxu0 0.0
    %1485 = vmatpush1.msra.mxu0 0.0
    %1486 = vmatprep.subr.mxu0 0.0
    %1487 = vmatpush1.msra.mxu0 0.0
    %1488 = vmatprep.subr.mxu0 0.0
    %1489 = vmatpush1.msra.mxu0 0.0
    %1490 = vmatprep.subr.mxu0 0.0
    %1491 = vmatpush1.msra.mxu0 0.0
    %1492 = vmatprep.subr.mxu0 0.0
    %1493 = vmatpush1.msra.mxu0 0.0
    %1494 = vmatprep.subr.mxu0 0.0
    %1495 = vmatpush1.msra.mxu0 0.0
    %1496 = vmatprep.subr.mxu0 0.0
    %1497 = vmatpush1.msra.mxu0 0.0
    %1498 = vmatprep.subr.mxu0 0.0
    %1499 = vmatpush1.msra.mxu0 0.0
    %1500 = vmatprep.subr.mxu0 0.0
    %1501 = vmatpush1.msra.mxu0 0.0
    %1502 = vmatprep.subr.mxu0 0.0
    %1503 = vmatpush1.msra.mxu0 0.0
    %1504 = vmatprep.subr.mxu0 0.0
    %1505 = vmatpush1.msra.mxu0 0.0
    %1506 = vmatprep.subr.mxu0 0.0
    %1507 = vmatpush1.msra.mxu0 0.0
    %1508 = vmatprep.subr.mxu0 0.0
    %1509 = vmatpush1.msra.mxu0 0.0
    %1510 = vmatprep.subr.mxu0 0.0
    %1511 = vmatpush1.msra.mxu0 0.0
    %1512 = vmatprep.subr.mxu0 0.0
    %1513 = vmatpush1.msra.mxu0 0.0
    %1514 = vmatprep.subr.mxu0 0.0
    %1515 = vmatpush1.msra.mxu0 0.0
    %1516 = vmatprep.subr.mxu0 0.0
    %1517 = vmatpush1.msra.mxu0 0.0
    %1518 = vmatprep.subr.mxu0 0.0
    %1519 = vmatpush1.msra.mxu0 0.0
    %1520 = vmatprep.subr.mxu0 0.0
    %1521 = vmatpush1.msra.mxu0 0.0
    %1522 = vmatprep.subr.mxu0 0.0
    %1523 = vmatpush1.msra.mxu0 0.0
    %1524 = vmatprep.subr.mxu0 0.0
    %1525 = vmatpush1.msra.mxu0 0.0
    %1526 = vmatprep.mubr.f32.mxu0 0.0
    %1527 = vmatmul.mubr.f32.gmra.mrb[0].mxu0 %v1460
    %v1528 = vpop.f32.mrb[0].mxu0
    %v1529 = vadd.f32 0.0, %v1528
    %v1530 = vpop.f32.mrb[0].mxu0
    %1531 = vdwg.mxu0
    %1534 = vrot.lane.b32.xlu0 %v1149, 8
    %v1535 = vpop.permute.xlu0 %1534
    %1536 = vrot.lane.b32.xlu0 %v1225, 8
    %v1537 = vpop.permute.xlu0 %1536
    %1542 = vrot.lane.b32.xlu0 %v1301, 16
    %v1543 = vpop.permute.xlu0 %1542
    %1544 = vrot.lane.b32.xlu0 %v1377, 16
    %v1545 = vpop.permute.xlu0 %1544
    %1550 = vrot.lane.b32.xlu0 %v1453, 24
    %v1551 = vpop.permute.xlu0 %1550
    %1552 = vrot.lane.b32.xlu0 %v1529, 24
    %v1553 = vpop.permute.xlu0 %1552
    %v1556 = vsel %vm221, %v997, %v1535
    %v1557 = vsel %vm221, %v1073, %v1537
    %vm1558 = vcmask 130048
    %v1559 = vsel %vm1558, %v1556, %v1543
    %v1560 = vsel %vm1558, %v1557, %v1545
    %vm1561 = vcmask 195584
    %v1562 = vsel %vm1561, %v1559, %v1551
    %v1563 = vsel %vm1561, %v1560, %v1553
    %v1564 = vld [vmem:[%s3] sm:$0xff]
    %v1565 = vld [vmem:[%s3 + $0x8] sm:$0xff]
    %v1566 = vld [vmem:[%s3 + $0x10] sm:$0xff]
    %v1567 = vld [vmem:[%s3 + $0x18] sm:$0xff]
    %v1568 = vld [vmem:[%s4] sm:$0x1]
    %v1570 = vlaneseq
    %v1571 = vshrl.u32 %v1570, 7
    %v1572 = vsub.s32 0, %v1571
    %v1573 = vrot.slane %v1568, %v1572
    %v1576 = vsel %vm107, %v1562, 0
    %v1579 = vsel %vm107, %v1563, 0
    %1581 = vmatprep.subr.mxu0 0.0
    %1582 = vmatpush1.msra.mxu0 %v1564
    %1583 = vmatprep.subr.mxu0 0.0
    %1584 = vmatpush1.msra.mxu0 %v1565
    %1585 = vmatprep.subr.mxu0 0.0
    %1586 = vmatpush1.msra.mxu0 %v1566
    %1587 = vmatprep.subr.mxu0 0.0
    %1588 = vmatpush1.msra.mxu0 %v1567
    %1589 = vmatprep.subr.mxu0 0.0
    %1590 = vmatpush1.msra.mxu0 0.0
    %1591 = vmatprep.subr.mxu0 0.0
    %1592 = vmatpush1.msra.mxu0 0.0
    %1593 = vmatprep.subr.mxu0 0.0
    %1594 = vmatpush1.msra.mxu0 0.0
    %1595 = vmatprep.subr.mxu0 0.0
    %1596 = vmatpush1.msra.mxu0 0.0
    %1597 = vmatprep.subr.mxu0 0.0
    %1598 = vmatpush1.msra.mxu0 0.0
    %1599 = vmatprep.subr.mxu0 0.0
    %1600 = vmatpush1.msra.mxu0 0.0
    %1601 = vmatprep.subr.mxu0 0.0
    %1602 = vmatpush1.msra.mxu0 0.0
    %1603 = vmatprep.subr.mxu0 0.0
    %1604 = vmatpush1.msra.mxu0 0.0
    %1605 = vmatprep.subr.mxu0 0.0
    %1606 = vmatpush1.msra.mxu0 0.0
    %1607 = vmatprep.subr.mxu0 0.0
    %1608 = vmatpush1.msra.mxu0 0.0
    %1609 = vmatprep.subr.mxu0 0.0
    %1610 = vmatpush1.msra.mxu0 0.0
    %1611 = vmatprep.subr.mxu0 0.0
    %1612 = vmatpush1.msra.mxu0 0.0
    %1613 = vmatprep.subr.mxu0 0.0
    %1614 = vmatpush1.msra.mxu0 0.0
    %1615 = vmatprep.subr.mxu0 0.0
    %1616 = vmatpush1.msra.mxu0 0.0
    %1617 = vmatprep.subr.mxu0 0.0
    %1618 = vmatpush1.msra.mxu0 0.0
    %1619 = vmatprep.subr.mxu0 0.0
    %1620 = vmatpush1.msra.mxu0 0.0
    %1621 = vmatprep.subr.mxu0 0.0
    %1622 = vmatpush1.msra.mxu0 0.0
    %1623 = vmatprep.subr.mxu0 0.0
    %1624 = vmatpush1.msra.mxu0 0.0
    %1625 = vmatprep.subr.mxu0 0.0
    %1626 = vmatpush1.msra.mxu0 0.0
    %1627 = vmatprep.subr.mxu0 0.0
    %1628 = vmatpush1.msra.mxu0 0.0
    %1629 = vmatprep.subr.mxu0 0.0
    %1630 = vmatpush1.msra.mxu0 0.0
    %1631 = vmatprep.subr.mxu0 0.0
    %1632 = vmatpush1.msra.mxu0 0.0
    %1633 = vmatprep.subr.mxu0 0.0
    %1634 = vmatpush1.msra.mxu0 0.0
    %1635 = vmatprep.subr.mxu0 0.0
    %1636 = vmatpush1.msra.mxu0 0.0
    %1637 = vmatprep.subr.mxu0 0.0
    %1638 = vmatpush1.msra.mxu0 0.0
    %1639 = vmatprep.subr.mxu0 0.0
    %1640 = vmatpush1.msra.mxu0 0.0
    %1641 = vmatprep.subr.mxu0 0.0
    %1642 = vmatpush1.msra.mxu0 0.0
    %1643 = vmatprep.subr.mxu0 0.0
    %1644 = vmatpush1.msra.mxu0 0.0
    %1645 = vmatprep.mubr.f32.mxu0 0.0
    %1646 = vmatmul.mubr.f32.gmra.mrb[0].mxu0 %v1576
    %v1647 = vpop.f32.mrb[0].mxu0
    %v1648 = vadd.f32 %v1573, %v1647
    %v1649 = vpop.f32.mrb[0].mxu0
    %1650 = vmatprep.mubr.f32.mxu0 0.0
    %1651 = vmatmul.mubr.f32.gmra.mrb[0].mxu0 %v1579
    %v1652 = vpop.f32.mrb[0].mxu0
    %v1653 = vadd.f32 %v1573, %v1652
    %v1654 = vpop.f32.mrb[0].mxu0
    %1655 = vdwg.mxu0
    %v1656 = vadd.f32 %v94, %v1648
    %v1657 = vadd.f32 %v95, %v1653
    %v1658 = vld [vmem:[#allocation5] sm:$0x1]
    %v1659 = vld [vmem:[#allocation7] sm:$0x1]
    %v1660 = vsel %vm107, %v1656, 0.0
    %1661 = vadd.xlane.f32.xlu0 %v1660
    %v1662 = vpop.xlane.xlu0 %1661
    %v1663 = vsel %vm107, %v1657, 0.0
    %1664 = vadd.xlane.f32.xlu0 %v1663
    %v1665 = vpop.xlane.xlu0 %1664
    %v1666 = vrcp.pop 32.0
    %v1667 = vmul.f32 %v1662, %v1666
    %v1668 = vmul.f32 %v1665, %v1666
    %v1669 = vsub.f32 %v1656, %v1667
    %v1670 = vsub.f32 %v1657, %v1668
    %v1671 = vmul.f32 %v1669, %v1669
    %v1672 = vmul.f32 %v1670, %v1670
    %v1673 = vsel %vm107, %v1671, 0.0
    %1674 = vadd.xlane.f32.xlu0 %v1673
    %v1675 = vpop.xlane.xlu0 %1674
    %v1676 = vsel %vm107, %v1672, 0.0
    %1677 = vadd.xlane.f32.xlu0 %v1676
    %v1678 = vpop.xlane.xlu0 %1677
    %v1679 = vmul.f32 %v1675, %v1666
    %v1680 = vmul.f32 %v1678, %v1666
    %v1681 = vadd.f32 %v1679, 1e-08
    %v1682 = vadd.f32 %v1680, 1e-08
    %v1683 = vrsqrt.pop %v1681
    %v1684 = vrsqrt.pop %v1682
    %v1685 = vmul.f32 %v1669, %v1683
    %v1686 = vmul.f32 %v1670, %v1684
    %v1688 = vlaneseq
    %v1689 = vshrl.u32 %v1688, 7
    %v1690 = vsub.s32 0, %v1689
    %v1691 = vrot.slane %v1658, %v1690
    %v1693 = vmul.f32 %v1685, %v1691
    %v1694 = vmul.f32 %v1686, %v1691
    %v1696 = vlaneseq
    %v1697 = vshrl.u32 %v1696, 7
    %v1698 = vsub.s32 0, %v1697
    %v1699 = vrot.slane %v1659, %v1698
    %v1701 = vadd.f32 %v1693, %v1699
    %v1702 = vadd.f32 %v1694, %v1699
    %v1703 = vld [vmem:[%s7] sm:$0xff]
    %v1704 = vld [vmem:[%s7 + $0x8] sm:$0xff]
    %v1705 = vld [vmem:[%s7 + $0x10] sm:$0xff]
    %v1706 = vld [vmem:[%s7 + $0x18] sm:$0xff]
    %v1707 = vld [vmem:[#allocation8] sm:$0x1]
    %v1709 = vlaneseq
    %v1710 = vshrl.u32 %v1709, 7
    %v1711 = vsub.s32 0, %v1710
    %v1712 = vrot.slane %v1707, %v1711
    %v1715 = vsel %vm107, %v1701, 0
    %v1718 = vsel %vm107, %v1702, 0
    %1720 = vmatprep.subr.mxu0 0.0
    %1721 = vmatpush1.msra.mxu0 %v1703
    %1722 = vmatprep.subr.mxu0 0.0
    %1723 = vmatpush1.msra.mxu0 %v1704
    %1724 = vmatprep.subr.mxu0 0.0
    %1725 = vmatpush1.msra.mxu0 %v1705
    %1726 = vmatprep.subr.mxu0 0.0
    %1727 = vmatpush1.msra.mxu0 %v1706
    %1728 = vmatprep.subr.mxu0 0.0
    %1729 = vmatpush1.msra.mxu0 0.0
    %1730 = vmatprep.subr.mxu0 0.0
    %1731 = vmatpush1.msra.mxu0 0.0
    %1732 = vmatprep.subr.mxu0 0.0
    %1733 = vmatpush1.msra.mxu0 0.0
    %1734 = vmatprep.subr.mxu0 0.0
    %1735 = vmatpush1.msra.mxu0 0.0
    %1736 = vmatprep.subr.mxu0 0.0
    %1737 = vmatpush1.msra.mxu0 0.0
    %1738 = vmatprep.subr.mxu0 0.0
    %1739 = vmatpush1.msra.mxu0 0.0
    %1740 = vmatprep.subr.mxu0 0.0
    %1741 = vmatpush1.msra.mxu0 0.0
    %1742 = vmatprep.subr.mxu0 0.0
    %1743 = vmatpush1.msra.mxu0 0.0
    %1744 = vmatprep.subr.mxu0 0.0
    %1745 = vmatpush1.msra.mxu0 0.0
    %1746 = vmatprep.subr.mxu0 0.0
    %1747 = vmatpush1.msra.mxu0 0.0
    %1748 = vmatprep.subr.mxu0 0.0
    %1749 = vmatpush1.msra.mxu0 0.0
    %1750 = vmatprep.subr.mxu0 0.0
    %1751 = vmatpush1.msra.mxu0 0.0
    %1752 = vmatprep.subr.mxu0 0.0
    %1753 = vmatpush1.msra.mxu0 0.0
    %1754 = vmatprep.subr.mxu0 0.0
    %1755 = vmatpush1.msra.mxu0 0.0
    %1756 = vmatprep.subr.mxu0 0.0
    %1757 = vmatpush1.msra.mxu0 0.0
    %1758 = vmatprep.subr.mxu0 0.0
    %1759 = vmatpush1.msra.mxu0 0.0
    %1760 = vmatprep.subr.mxu0 0.0
    %1761 = vmatpush1.msra.mxu0 0.0
    %1762 = vmatprep.subr.mxu0 0.0
    %1763 = vmatpush1.msra.mxu0 0.0
    %1764 = vmatprep.subr.mxu0 0.0
    %1765 = vmatpush1.msra.mxu0 0.0
    %1766 = vmatprep.subr.mxu0 0.0
    %1767 = vmatpush1.msra.mxu0 0.0
    %1768 = vmatprep.subr.mxu0 0.0
    %1769 = vmatpush1.msra.mxu0 0.0
    %1770 = vmatprep.subr.mxu0 0.0
    %1771 = vmatpush1.msra.mxu0 0.0
    %1772 = vmatprep.subr.mxu0 0.0
    %1773 = vmatpush1.msra.mxu0 0.0
    %1774 = vmatprep.subr.mxu0 0.0
    %1775 = vmatpush1.msra.mxu0 0.0
    %1776 = vmatprep.subr.mxu0 0.0
    %1777 = vmatpush1.msra.mxu0 0.0
    %1778 = vmatprep.subr.mxu0 0.0
    %1779 = vmatpush1.msra.mxu0 0.0
    %1780 = vmatprep.subr.mxu0 0.0
    %1781 = vmatpush1.msra.mxu0 0.0
    %1782 = vmatprep.subr.mxu0 0.0
    %1783 = vmatpush1.msra.mxu0 0.0
    %1784 = vmatprep.mubr.f32.mxu0 0.0
    %1785 = vmatmul.mubr.f32.gmra.mrb[0].mxu0 %v1715
    %v1786 = vpop.f32.mrb[0].mxu0
    %v1787 = vadd.f32 %v1712, %v1786
    %v1788 = vpop.f32.mrb[0].mxu0
    %1789 = vmatprep.mubr.f32.mxu0 0.0
    %1790 = vmatmul.mubr.f32.gmra.mrb[0].mxu0 %v1718
    %v1791 = vpop.f32.mrb[0].mxu0
    %v1792 = vadd.f32 %v1712, %v1791
    %v1793 = vpop.f32.mrb[0].mxu0
    %1794 = vdwg.mxu0
    %v1795 = vmax.f32 %v1787, 0.0
    %v1796 = vmax.f32 %v1792, 0.0
    %v1797 = vld [vmem:[%s9] sm:$0xff]
    %v1798 = vld [vmem:[%s9 + $0x8] sm:$0xff]
    %v1799 = vld [vmem:[%s9 + $0x10] sm:$0xff]
    %v1800 = vld [vmem:[%s9 + $0x18] sm:$0xff]
    %v1801 = vld [vmem:[%s9 + $0x20] sm:$0xff]
    %v1802 = vld [vmem:[%s9 + $0x28] sm:$0xff]
    %v1803 = vld [vmem:[%s9 + $0x30] sm:$0xff]
    %v1804 = vld [vmem:[%s9 + $0x38] sm:$0xff]
    %v1805 = vld [vmem:[%s10] sm:$0x1]
    %v1807 = vlaneseq
    %v1808 = vshrl.u32 %v1807, 7
    %v1809 = vsub.s32 0, %v1808
    %v1810 = vrot.slane %v1805, %v1809
    %vm1812 = vcmask 523264
    %v1814 = vsel %vm1812, %v1795, 0
    %v1817 = vsel %vm1812, %v1796, 0
    %1819 = vmatprep.subr.mxu0 0.0
    %1820 = vmatpush1.msra.mxu0 %v1797
    %1821 = vmatprep.subr.mxu0 0.0
    %1822 = vmatpush1.msra.mxu0 %v1798
    %1823 = vmatprep.subr.mxu0 0.0
    %1824 = vmatpush1.msra.mxu0 %v1799
    %1825 = vmatprep.subr.mxu0 0.0
    %1826 = vmatpush1.msra.mxu0 %v1800
    %1827 = vmatprep.subr.mxu0 0.0
    %1828 = vmatpush1.msra.mxu0 %v1801
    %1829 = vmatprep.subr.mxu0 0.0
    %1830 = vmatpush1.msra.mxu0 %v1802
    %1831 = vmatprep.subr.mxu0 0.0
    %1832 = vmatpush1.msra.mxu0 %v1803
    %1833 = vmatprep.subr.mxu0 0.0
    %1834 = vmatpush1.msra.mxu0 %v1804
    %1835 = vmatprep.subr.mxu0 0.0
    %1836 = vmatpush1.msra.mxu0 0.0
    %1837 = vmatprep.subr.mxu0 0.0
    %1838 = vmatpush1.msra.mxu0 0.0
    %1839 = vmatprep.subr.mxu0 0.0
    %1840 = vmatpush1.msra.mxu0 0.0
    %1841 = vmatprep.subr.mxu0 0.0
    %1842 = vmatpush1.msra.mxu0 0.0
    %1843 = vmatprep.subr.mxu0 0.0
    %1844 = vmatpush1.msra.mxu0 0.0
    %1845 = vmatprep.subr.mxu0 0.0
    %1846 = vmatpush1.msra.mxu0 0.0
    %1847 = vmatprep.subr.mxu0 0.0
    %1848 = vmatpush1.msra.mxu0 0.0
    %1849 = vmatprep.subr.mxu0 0.0
    %1850 = vmatpush1.msra.mxu0 0.0
    %1851 = vmatprep.subr.mxu0 0.0
    %1852 = vmatpush1.msra.mxu0 0.0
    %1853 = vmatprep.subr.mxu0 0.0
    %1854 = vmatpush1.msra.mxu0 0.0
    %1855 = vmatprep.subr.mxu0 0.0
    %1856 = vmatpush1.msra.mxu0 0.0
    %1857 = vmatprep.subr.mxu0 0.0
    %1858 = vmatpush1.msra.mxu0 0.0
    %1859 = vmatprep.subr.mxu0 0.0
    %1860 = vmatpush1.msra.mxu0 0.0
    %1861 = vmatprep.subr.mxu0 0.0
    %1862 = vmatpush1.msra.mxu0 0.0
    %1863 = vmatprep.subr.mxu0 0.0
    %1864 = vmatpush1.msra.mxu0 0.0
    %1865 = vmatprep.subr.mxu0 0.0
    %1866 = vmatpush1.msra.mxu0 0.0
    %1867 = vmatprep.subr.mxu0 0.0
    %1868 = vmatpush1.msra.mxu0 0.0
    %1869 = vmatprep.subr.mxu0 0.0
    %1870 = vmatpush1.msra.mxu0 0.0
    %1871 = vmatprep.subr.mxu0 0.0
    %1872 = vmatpush1.msra.mxu0 0.0
    %1873 = vmatprep.subr.mxu0 0.0
    %1874 = vmatpush1.msra.mxu0 0.0
    %1875 = vmatprep.subr.mxu0 0.0
    %1876 = vmatpush1.msra.mxu0 0.0
    %1877 = vmatprep.subr.mxu0 0.0
    %1878 = vmatpush1.msra.mxu0 0.0
    %1879 = vmatprep.subr.mxu0 0.0
    %1880 = vmatpush1.msra.mxu0 0.0
    %1881 = vmatprep.subr.mxu0 0.0
    %1882 = vmatpush1.msra.mxu0 0.0
    %1883 = vmatprep.mubr.f32.mxu0 0.0
    %1884 = vmatmul.mubr.f32.gmra.mrb[0].mxu0 %v1814
    %v1885 = vpop.f32.mrb[0].mxu0
    %v1886 = vadd.f32 %v1810, %v1885
    %v1887 = vpop.f32.mrb[0].mxu0
    %1888 = vmatprep.mubr.f32.mxu0 0.0
    %1889 = vmatmul.mubr.f32.gmra.mrb[0].mxu0 %v1817
    %v1890 = vpop.f32.mrb[0].mxu0
    %v1891 = vadd.f32 %v1810, %v1890
    %v1892 = vpop.f32.mrb[0].mxu0
    %1893 = vdwg.mxu0
    %v1894 = vadd.f32 %v1701, %v1886
    %v1895 = vadd.f32 %v1702, %v1891
    %v1896 = vld [vmem:[%s11] sm:$0x1]
    %v1897 = vld [vmem:[%s12] sm:$0x1]
    %v1898 = vsel %vm107, %v1894, 0.0
    %1899 = vadd.xlane.f32.xlu0 %v1898
    %v1900 = vpop.xlane.xlu0 %1899
    %v1901 = vsel %vm107, %v1895, 0.0
    %1902 = vadd.xlane.f32.xlu0 %v1901
    %v1903 = vpop.xlane.xlu0 %1902
    %v1904 = vmul.f32 %v1900, %v1666
    %v1905 = vmul.f32 %v1903, %v1666
    %v1906 = vsub.f32 %v1894, %v1904
    %v1907 = vsub.f32 %v1895, %v1905
    %v1908 = vmul.f32 %v1906, %v1906
    %v1909 = vmul.f32 %v1907, %v1907
    %v1910 = vsel %vm107, %v1908, 0.0
    %1911 = vadd.xlane.f32.xlu0 %v1910
    %v1912 = vpop.xlane.xlu0 %1911
    %v1913 = vsel %vm107, %v1909, 0.0
    %1914 = vadd.xlane.f32.xlu0 %v1913
    %v1915 = vpop.xlane.xlu0 %1914
    %v1916 = vmul.f32 %v1912, %v1666
    %v1917 = vmul.f32 %v1915, %v1666
    %v1918 = vadd.f32 %v1916, 1e-08
    %v1919 = vadd.f32 %v1917, 1e-08
    %v1920 = vrsqrt.pop %v1918
    %v1921 = vrsqrt.pop %v1919
    %v1922 = vmul.f32 %v1906, %v1920
    %v1923 = vmul.f32 %v1907, %v1921
    %v1925 = vlaneseq
    %v1926 = vshrl.u32 %v1925, 7
    %v1927 = vsub.s32 0, %v1926
    %v1928 = vrot.slane %v1896, %v1927
    %v1930 = vmul.f32 %v1922, %v1928
    %v1931 = vmul.f32 %v1923, %v1928
    %v1933 = vlaneseq
    %v1934 = vshrl.u32 %v1933, 7
    %v1935 = vsub.s32 0, %v1934
    %v1936 = vrot.slane %v1897, %v1935
    %v1938 = vadd.f32 %v1930, %v1936
    %v1939 = vadd.f32 %v1931, %v1936
    %1940 = vst.msk [vmem:[#allocation10] sm:$0xff] %vm107, %v1938
    %1941 = vst.msk [vmem:[#allocation10 + $0x8] sm:$0xff] %vm107, %v1939
    // Predicated region
    $region70: #{tpu_custom_call.1} parent=1 // pred_check
      _
    $region71: #{tpu_custom_call.1} parent=1 // pred_check_branch
      %1943 = sbr.rel (0) target = $region73
    $region72: #{tpu_custom_call.1} parent=1 // pred_region
      %s1945 = ssub.s32 256, 256
      %1946 = vsyncadd [#allocation4], %s1945
      %s1947 = sshll.u32 [#allocation10], 4
      %s1948 = int_to_ptr.vmem [resolvable:$true] %s1947
      %1953 = dma.vmem_to_hbm [thread:$0]  %s1948, 256, %s13, [#allocation4], 128, 128, 8
    $region73: #{tpu_custom_call.1} parent=1 // pred_fallthru
      _
    // Predicated region
    $region74: #{tpu_custom_call.1} parent=1 // pred_check
      _
    $region75: #{tpu_custom_call.1} parent=1 // pred_check_branch
      %1955 = sbr.rel (0) target = $region77
    $region76: #{tpu_custom_call.1} parent=1 // pred_region
      %1956 = dma.done [#allocation4], 256
    $region77: #{tpu_custom_call.1} parent=1 // pred_fallthru
      _
    %1957 = vsyncpa [#allocation3], 1
    %1958 = vsyncpa [#allocation6], 1
    %1959 = vsyncpa [#allocation9], 1
    %1960 = vsyncpa [#allocation4], 1

</llo_original>
